<compile_context>
chip_gen: v7x
topology: tpu7x:2x2x1
jax: 0.10.0
libtpu: 0.0.40
codegen_flags: <defaults>
</compile_context>

<pallas_src>
import jax
import jax.numpy as jnp
from jax import lax
from jax.experimental import pallas as pl
from jax.experimental.pallas import tpu as pltpu

INPUT_DIM = 512
H1 = 256
H2 = 64
H2_PAD = 128      # lane-aligned padded hidden-2 width
OUT = 2
OUT_PAD_T = 8     # sublane-aligned padded logit rows (transposed output)


def _round_up(n, m):
    return pl.cdiv(n, m) * m


def _mlp_kernel(x_ref, w1_ref, b1_ref, w2_ref, b2_ref, w3t_ref, b3t_ref, o_ref):
    # Layer 1: (TB,512)bf16 @ (512,256)bf16 -> f32 acc, + b1, ReLU
    h1 = jnp.dot(x_ref[...], w1_ref[...], preferred_element_type=jnp.float32)
    h1 = jnp.maximum(h1 + b1_ref[...], 0.0)
    # Layer 2 (padded cols): (TB,256)bf16 @ (256,128)bf16 -> f32 acc, + b2, ReLU
    h2 = jnp.dot(h1.astype(jnp.bfloat16), w2_ref[...],
                 preferred_element_type=jnp.float32)
    h2 = jnp.maximum(h2 + b2_ref[...], 0.0)
    # Layer 3, transposed (A.B^T / "NT" form): (8,128) . (TB,128)^T -> (8, TB).
    # Rows 2..7 are zero padding; lowers natively on the MXU (no h2 transpose).
    o_t = lax.dot_general(
        w3t_ref[...], h2,
        dimension_numbers=(((1,), (1,)), ((), ())),
        preferred_element_type=jnp.float32)
    o_ref[...] = (o_t + b3t_ref[...]).astype(o_ref.dtype)


def face_verification_mlp(x, prepared_params, *, tb=2048):
    """x: (B, INPUT_DIM) float32 -> (B, 2) float32 logits."""
    w1, b1, w2p, b2p, w3tp, b3tp = prepared_params
    B = x.shape[0]

    # Stream the activations as bf16 (f32 accumulation happens in the kernel).
    x = x.astype(jnp.bfloat16)

    if B < 256:
        # Single small tile: pad once (tiny) so the block never exceeds the array.
        x = jnp.pad(x, ((0, 256 - B), (0, 0)))
        tb_eff = 256
    else:
        # Cap the tile so (a) it never exceeds the array, (b) there are >= 2 grid tiles
        # for the two v7x TensorCores, (c) VMEM stays comfortable (<= 4096 rows).
        tb_eff = max(256, min(tb, _round_up(pl.cdiv(B, 2), 256), 4096))

    rows = x.shape[0]
    num_tiles = pl.cdiv(rows, tb_eff)   # ragged last tile handled by Pallas edge blocks

    flops = 2 * rows * (INPUT_DIM * H1 + H1 * H2_PAD + H2_PAD * OUT_PAD_T)
    bytes_accessed = (rows * (INPUT_DIM * 2 + OUT_PAD_T * 4)
                      + (INPUT_DIM * H1 + H1 * H2_PAD) * 2
                      + (H1 + H2_PAD + OUT_PAD_T * H2_PAD + OUT_PAD_T) * 4)

    out_t = pl.pallas_call(
        _mlp_kernel,
        out_shape=jax.ShapeDtypeStruct((OUT_PAD_T, rows), jnp.float32),
        grid=(num_tiles,),
        in_specs=[
            pl.BlockSpec((tb_eff, INPUT_DIM), lambda i: (i, 0)),    # x tile (streamed, bf16)
            pl.BlockSpec((INPUT_DIM, H1), lambda i: (0, 0)),        # w1 (resident, bf16)
            pl.BlockSpec((1, H1), lambda i: (0, 0)),                # b1 (f32)
            pl.BlockSpec((H1, H2_PAD), lambda i: (0, 0)),           # w2 (padded, bf16)
            pl.BlockSpec((1, H2_PAD), lambda i: (0, 0)),            # b2 (padded, f32)
            pl.BlockSpec((OUT_PAD_T, H2_PAD), lambda i: (0, 0)),    # w3^T (padded, f32)
            pl.BlockSpec((OUT_PAD_T, 1), lambda i: (0, 0)),         # b3^T (padded, f32)
        ],
        out_specs=pl.BlockSpec((OUT_PAD_T, tb_eff), lambda i: (0, i)),  # lane-dense logits^T
        compiler_params=pltpu.CompilerParams(
            dimension_semantics=("parallel",),
            vmem_limit_bytes=48 * 1024 * 1024,
        ),
        cost_estimate=pl.CostEstimate(
            flops=flops, transcendentals=0, bytes_accessed=bytes_accessed),
    )(x, w1, b1, w2p, b2p, w3tp, b3tp)

    # Tiny glue: (8, rows) -> (B, 2).
    return out_t[:OUT, :B].T


def prepare_params(params):
    """One-time padding / transposition / dtype casting of PyTorch-equivalent params.

    Input weights are (in_features, out_features); returns the VMEM-resident layout:
      w1 (512,256) bf16, b1 (1,256) f32, w2p (256,128) bf16, b2p (1,128) f32,
      w3tp (8,128) f32 = padded transpose of w3, b3tp (8,1) f32.
    """
    w1, b1, w2, b2, w3, b3 = params
    w1c = w1.astype(jnp.bfloat16)
    b1p = b1.reshape(1, H1).astype(jnp.float32)
    w2p = jnp.zeros((H1, H2_PAD), jnp.float32).at[:, :H2].set(w2).astype(jnp.bfloat16)
    b2p = jnp.zeros((1, H2_PAD), jnp.float32).at[:, :H2].set(b2)
    w3tp = jnp.zeros((OUT_PAD_T, H2_PAD), jnp.float32).at[:OUT, :H2].set(w3.T)
    b3tp = jnp.zeros((OUT_PAD_T, 1), jnp.float32).at[:OUT, 0].set(b3)
    return (w1c, b1p, w2p, b2p, w3tp, b3tp)


def init_params(key):
    """Deterministic init mimicking PyTorch nn.Linear default (uniform +/- 1/sqrt(fan_in)).
    Weights stored as (in_features, out_features) so each layer is y = x @ W + b."""
    keys = jax.random.split(key, 6)

    def lin(kw, kb, fan_in, fan_out):
        bound = 1.0 / jnp.sqrt(fan_in)
        w = jax.random.uniform(kw, (fan_in, fan_out), jnp.float32, -bound, bound)
        b = jax.random.uniform(kb, (fan_out,), jnp.float32, -bound, bound)
        return w, b

    w1, b1 = lin(keys[0], keys[1], INPUT_DIM, H1)
    w2, b2 = lin(keys[2], keys[3], H1, H2)
    w3, b3 = lin(keys[4], keys[5], H2, OUT)
    return (w1, b1, w2, b2, w3, b3)


if __name__ == "__main__":
    key = jax.random.PRNGKey(0)
    kx, kp = jax.random.split(key)
    params = init_params(kp)
    prepared = prepare_params(params)   # padding/casting hoisted out of the forward path
    w1, b1, w2, b2, w3, b3 = params

    def reference(xx):
        h = jnp.maximum(xx @ w1 + b1, 0.0)
        h = jnp.maximum(h @ w2 + b2, 0.0)
        return h @ w3 + b3

    # bf16 streaming => compare at bf16-level tolerance (the f32 reference itself runs at
    # default TPU matmul precision, which also truncates operands to bf16 on the MXU).
    ATOL = RTOL = 2e-2

    # Small-batch check (single tile, batch padded 8 -> 256).
    B = 8
    x = jax.random.normal(kx, (B, INPUT_DIM), jnp.float32)
    out = jax.block_until_ready(face_verification_mlp(x, prepared))
    assert out.shape == (B, OUT)
    assert jnp.allclose(out, reference(x), atol=ATOL, rtol=RTOL)

    # Ragged multi-tile check (exercises tile selection, the pipelined "parallel" batch
    # grid, and the unpadded partial edge block).
    B2 = 520
    x2 = jax.random.normal(jax.random.PRNGKey(1), (B2, INPUT_DIM), jnp.float32)
    out2 = jax.block_until_ready(face_verification_mlp(x2, prepared))
    assert out2.shape == (B2, OUT)
    assert jnp.allclose(out2, reference(x2), atol=ATOL, rtol=RTOL)

    print("KERNEL_OK")
</pallas_src>

<mosaic_0001>
module attributes {stable_mosaic.version = 11 : i64} {
  func.func @_mlp_kernel(%arg0: i32, %arg1: memref<256x512xbf16, #tpu.memory_space<vmem>>, %arg2: memref<512x256xbf16, #tpu.memory_space<vmem>>, %arg3: memref<1x256xf32, #tpu.memory_space<vmem>>, %arg4: memref<256x128xbf16, #tpu.memory_space<vmem>>, %arg5: memref<1x128xf32, #tpu.memory_space<vmem>>, %arg6: memref<8x128xf32, #tpu.memory_space<vmem>>, %arg7: memref<8x1xf32, #tpu.memory_space<vmem>>, %arg8: memref<8x256xf32, #tpu.memory_space<vmem>>) attributes {dimension_semantics = [#tpu.dimension_semantics<parallel>], iteration_bounds = array<i64: 1>, scalar_prefetch = 0 : i64, scratch_operands = 0 : i64, tpu.core_type = #tpu.core_type<tc>, window_params = [{transform_indices = @transform_0, window_bounds = array<i64: 256, 512>}, {pipeline_mode = #tpu.pipeline_mode<synchronous>, transform_indices = @transform_1, window_bounds = array<i64: 512, 256>}, {pipeline_mode = #tpu.pipeline_mode<synchronous>, transform_indices = @transform_2, window_bounds = array<i64: 1, 256>}, {pipeline_mode = #tpu.pipeline_mode<synchronous>, transform_indices = @transform_3, window_bounds = array<i64: 256, 128>}, {pipeline_mode = #tpu.pipeline_mode<synchronous>, transform_indices = @transform_4, window_bounds = array<i64: 1, 128>}, {pipeline_mode = #tpu.pipeline_mode<synchronous>, transform_indices = @transform_5, window_bounds = array<i64: 8, 128>}, {pipeline_mode = #tpu.pipeline_mode<synchronous>, transform_indices = @transform_6, window_bounds = array<i64: 8, 1>}, {transform_indices = @transform_7, window_bounds = array<i64: 8, 256>}]} {
    %c0 = arith.constant 0 : index
    %c0_0 = arith.constant 0 : index
    %0 = vector.load %arg1[%c0, %c0_0] : memref<256x512xbf16, #tpu.memory_space<vmem>>, vector<256x512xbf16>
    %c0_1 = arith.constant 0 : index
    %c0_2 = arith.constant 0 : index
    %1 = vector.load %arg2[%c0_1, %c0_2] : memref<512x256xbf16, #tpu.memory_space<vmem>>, vector<512x256xbf16>
    %cst = arith.constant dense<0.000000e+00> : vector<256x256xf32>
    %2 = tpu.matmul %0, %1, %cst {dimension_numbers = #tpu.dot_dimension_numbers<[1], [0], [0], [1], [0, 0, 1, 1], [], []>} : vector<256x512xbf16>, vector<512x256xbf16>, vector<256x256xf32> -> vector<256x256xf32>
    %c0_3 = arith.constant 0 : index
    %c0_4 = arith.constant 0 : index
    %3 = vector.load %arg3[%c0_3, %c0_4] : memref<1x256xf32, #tpu.memory_space<vmem>>, vector<1x256xf32>
    %4 = vector.broadcast %3 : vector<1x256xf32> to vector<256x256xf32>
    %5 = arith.addf %2, %4 : vector<256x256xf32>
    %cst_5 = arith.constant 0.000000e+00 : f32
    %6 = vector.broadcast %cst_5 : f32 to vector<256x256xf32>
    %7 = arith.maximumf %5, %6 : vector<256x256xf32>
    %8 = arith.truncf %7 : vector<256x256xf32> to vector<256x256xbf16>
    %c0_6 = arith.constant 0 : index
    %c0_7 = arith.constant 0 : index
    %9 = vector.load %arg4[%c0_6, %c0_7] : memref<256x128xbf16, #tpu.memory_space<vmem>>, vector<256x128xbf16>
    %cst_8 = arith.constant dense<0.000000e+00> : vector<256x128xf32>
    %10 = tpu.matmul %8, %9, %cst_8 {dimension_numbers = #tpu.dot_dimension_numbers<[1], [0], [0], [1], [0, 0, 1, 1], [], []>} : vector<256x256xbf16>, vector<256x128xbf16>, vector<256x128xf32> -> vector<256x128xf32>
    %c0_9 = arith.constant 0 : index
    %c0_10 = arith.constant 0 : index
    %11 = vector.load %arg5[%c0_9, %c0_10] : memref<1x128xf32, #tpu.memory_space<vmem>>, vector<1x128xf32>
    %12 = vector.broadcast %11 : vector<1x128xf32> to vector<256x128xf32>
    %13 = arith.addf %10, %12 : vector<256x128xf32>
    %cst_11 = arith.constant 0.000000e+00 : f32
    %14 = vector.broadcast %cst_11 : f32 to vector<256x128xf32>
    %15 = arith.maximumf %13, %14 : vector<256x128xf32>
    %c0_12 = arith.constant 0 : index
    %c0_13 = arith.constant 0 : index
    %16 = vector.load %arg6[%c0_12, %c0_13] : memref<8x128xf32, #tpu.memory_space<vmem>>, vector<8x128xf32>
    %cst_14 = arith.constant dense<0.000000e+00> : vector<8x256xf32>
    %17 = tpu.matmul %16, %15, %cst_14 {dimension_numbers = #tpu.dot_dimension_numbers<[1], [1], [0], [0], [0, 0, 1, 0], [], []>} : vector<8x128xf32>, vector<256x128xf32>, vector<8x256xf32> -> vector<8x256xf32>
    %c0_15 = arith.constant 0 : index
    %c0_16 = arith.constant 0 : index
    %18 = vector.load %arg7[%c0_15, %c0_16] : memref<8x1xf32, #tpu.memory_space<vmem>>, vector<8x1xf32>
    %19 = vector.broadcast %18 : vector<8x1xf32> to vector<8x256xf32>
    %20 = arith.addf %17, %19 : vector<8x256xf32>
    %c0_17 = arith.constant 0 : index
    %c0_18 = arith.constant 0 : index
    %21 = vector.load %arg8[%c0_17, %c0_18] : memref<8x256xf32, #tpu.memory_space<vmem>>, vector<8x256xf32>
    tpu.vector_store %arg8[%c0_17, %c0_18], %20 {strides = array<i32>} : memref<8x256xf32, #tpu.memory_space<vmem>>, vector<8x256xf32>,
    return
  }
  func.func @transform_0(%arg0: i32) -> (i32, i32) {
    %c0_i32 = arith.constant 0 : i32
    %c0_i32_0 = arith.constant 0 : i32
    return %arg0, %c0_i32 : i32, i32
  }
  func.func @transform_1(%arg0: i32) -> (i32, i32) {
    %c0_i32 = arith.constant 0 : i32
    %c0_i32_0 = arith.constant 0 : i32
    %c0_i32_1 = arith.constant 0 : i32
    return %c0_i32, %c0_i32_0 : i32, i32
  }
  func.func @transform_2(%arg0: i32) -> (i32, i32) {
    %c0_i32 = arith.constant 0 : i32
    %c0_i32_0 = arith.constant 0 : i32
    %c0_i32_1 = arith.constant 0 : i32
    return %c0_i32, %c0_i32_0 : i32, i32
  }
  func.func @transform_3(%arg0: i32) -> (i32, i32) {
    %c0_i32 = arith.constant 0 : i32
    %c0_i32_0 = arith.constant 0 : i32
    %c0_i32_1 = arith.constant 0 : i32
    return %c0_i32, %c0_i32_0 : i32, i32
  }
  func.func @transform_4(%arg0: i32) -> (i32, i32) {
    %c0_i32 = arith.constant 0 : i32
    %c0_i32_0 = arith.constant 0 : i32
    %c0_i32_1 = arith.constant 0 : i32
    return %c0_i32, %c0_i32_0 : i32, i32
  }
  func.func @transform_5(%arg0: i32) -> (i32, i32) {
    %c0_i32 = arith.constant 0 : i32
    %c0_i32_0 = arith.constant 0 : i32
    %c0_i32_1 = arith.constant 0 : i32
    return %c0_i32, %c0_i32_0 : i32, i32
  }
  func.func @transform_6(%arg0: i32) -> (i32, i32) {
    %c0_i32 = arith.constant 0 : i32
    %c0_i32_0 = arith.constant 0 : i32
    %c0_i32_1 = arith.constant 0 : i32
    return %c0_i32, %c0_i32_0 : i32, i32
  }
  func.func @transform_7(%arg0: i32) -> (i32, i32) {
    %c0_i32 = arith.constant 0 : i32
    %c0_i32_0 = arith.constant 0 : i32
    return %c0_i32, %arg0 : i32, i32
  }
}

</mosaic_0001>

<llo_original>
// kernel: tpu_custom_call.1
$region0: #{tpu_custom_call.1}
  #allocation0 [shape = 'u32[]', space=smem, size = 0x4, offset = 0x4, fixed_abs, tag = 'smem constant byte address 0x4 - core index']
  #allocation1 [shape = 'u32[144,128]{1,0:T(1,128)}', space=vmem, size = 0x12000, scoped, tag = 'internal scratch']
  %s0 = inlined_call_operand.hbm [shape: bf16[256,512], index: 0, kind: input, shape index: {}]
  %s1 = inlined_call_operand.hbm [shape: bf16[512,256], index: 1, kind: input, shape index: {}]
  %s2 = inlined_call_operand.vmem [shape: f32[1,256], index: 2, kind: input, shape index: {}]
  %s3 = inlined_call_operand.hbm [shape: bf16[256,128], index: 3, kind: input, shape index: {}]
  %s4 = inlined_call_operand.vmem [shape: f32[1,128], index: 4, kind: input, shape index: {}]
  %s5 = inlined_call_operand.vmem [shape: f32[8,128], index: 5, kind: input, shape index: {}]
  %s6 = inlined_call_operand.vmem [shape: f32[8,1], index: 6, kind: input, shape index: {}]
  %s7 = inlined_call_operand.hbm [shape: f32[8,256], index: 7, kind: output, shape index: {}]
  %s8 = sld [smem:[#allocation0]]
  $region50: #{tpu_custom_call.1} parent=0
    _
  %s10 = ssub.s32 1, %s8
  %s11 = scalar_select 0, %s10, %s8
  $region1: #{tpu_custom_call.1} parent=0
    #allocation2 [shape = 'u8[262144]{0}', space=vmem, size = 0x40000, scoped, tag = 'input window, operand 0, single buffered']
    #allocation3 [shape = 's32[1]{0}', space=sflag, size = 0x4, scoped, tag = 'scoped memory for tpu_custom_call.1']
    #allocation4 [shape = 's32[1]{0}', space=sflag, size = 0x4, scoped, tag = 'scoped memory for tpu_custom_call.1']
    #allocation5 [shape = 'u8[262144]{0}', space=vmem, size = 0x40000, scoped, tag = 'input window, operand 1, single buffered']
    #allocation6 [shape = 's32[1]{0}', space=sflag, size = 0x4, scoped, tag = 'scoped memory for tpu_custom_call.1']
    #allocation7 [shape = 'u8[65536]{0}', space=vmem, size = 0x10000, scoped, tag = 'input window, operand 3, single buffered']
    #allocation8 [shape = 'u8[8192]{0}', space=vmem, size = 0x2000, scoped, tag = 'output window, operand 0, single buffered']
    %12 = vsyncpa [#allocation3], 0
    %13 = vsyncpa [#allocation6], 0
    %14 = vsyncpa [#allocation4], 0
    // Predicated region
    $region2: #{tpu_custom_call.1} parent=1 // pred_check
      _
    $region3: #{tpu_custom_call.1} parent=1 // pred_check_branch
      %16 = sbr.rel (0) target = $region5
    $region4: #{tpu_custom_call.1} parent=1 // pred_region
      %s18 = ssub.s32 8192, 8192
      %19 = vsyncadd [#allocation3], %s18
      %s20 = sshll.u32 [#allocation2], 4
      %s21 = int_to_ptr.vmem [resolvable:$true] %s20
      %26 = dma.hbm_to_vmem [thread:$0]  %s0, 8192, %s21, [#allocation3], 256, 256, 16
    $region5: #{tpu_custom_call.1} parent=1 // pred_fallthru
      _
    // Predicated region
    $region6: #{tpu_custom_call.1} parent=1 // pred_check
      _
    $region7: #{tpu_custom_call.1} parent=1 // pred_check_branch
      %28 = sbr.rel (0) target = $region9
    $region8: #{tpu_custom_call.1} parent=1 // pred_region
      %s30 = ssub.s32 8192, 8192
      %31 = vsyncadd [#allocation6], %s30
      %s32 = sshll.u32 [#allocation5], 4
      %s33 = int_to_ptr.vmem [resolvable:$true] %s32
      %38 = dma.hbm_to_vmem [thread:$0]  %s1, 8192, %s33, [#allocation6], 128, 128, 8
    $region9: #{tpu_custom_call.1} parent=1 // pred_fallthru
      _
    // Predicated region
    $region10: #{tpu_custom_call.1} parent=1 // pred_check
      _
    $region11: #{tpu_custom_call.1} parent=1 // pred_check_branch
      %40 = sbr.rel (0) target = $region13
    $region12: #{tpu_custom_call.1} parent=1 // pred_region
      _
    $region13: #{tpu_custom_call.1} parent=1 // pred_fallthru
      _
    // Predicated region
    $region14: #{tpu_custom_call.1} parent=1 // pred_check
      _
    $region15: #{tpu_custom_call.1} parent=1 // pred_check_branch
      %42 = sbr.rel (0) target = $region17
    $region16: #{tpu_custom_call.1} parent=1 // pred_region
      %s44 = ssub.s32 2048, 2048
      %45 = vsyncadd [#allocation6], %s44
      %s46 = sshll.u32 [#allocation7], 4
      %s47 = int_to_ptr.vmem [resolvable:$true] %s46
      %52 = dma.hbm_to_vmem [thread:$0]  %s3, 2048, %s47, [#allocation6], 64, 64, 4
    $region17: #{tpu_custom_call.1} parent=1 // pred_fallthru
      _
    // Predicated region
    $region18: #{tpu_custom_call.1} parent=1 // pred_check
      _
    $region19: #{tpu_custom_call.1} parent=1 // pred_check_branch
      %54 = sbr.rel (0) target = $region21
    $region20: #{tpu_custom_call.1} parent=1 // pred_region
      _
    $region21: #{tpu_custom_call.1} parent=1 // pred_fallthru
      _
    // Predicated region
    $region22: #{tpu_custom_call.1} parent=1 // pred_check
      _
    $region23: #{tpu_custom_call.1} parent=1 // pred_check_branch
      %56 = sbr.rel (0) target = $region25
    $region24: #{tpu_custom_call.1} parent=1 // pred_region
      _
    $region25: #{tpu_custom_call.1} parent=1 // pred_fallthru
      _
    // Predicated region
    $region26: #{tpu_custom_call.1} parent=1 // pred_check
      _
    $region27: #{tpu_custom_call.1} parent=1 // pred_check_branch
      %58 = sbr.rel (0) target = $region29
    $region28: #{tpu_custom_call.1} parent=1 // pred_region
      _
    $region29: #{tpu_custom_call.1} parent=1 // pred_fallthru
      _
    // Predicated region
    $region30: #{tpu_custom_call.1} parent=1 // pred_check
      _
    $region31: #{tpu_custom_call.1} parent=1 // pred_check_branch
      %60 = sbr.rel (0) target = $region33
    $region32: #{tpu_custom_call.1} parent=1 // pred_region
      %61 = dma.done [#allocation3], 8192
    $region33: #{tpu_custom_call.1} parent=1 // pred_fallthru
      _
    // Predicated region
    $region34: #{tpu_custom_call.1} parent=1 // pred_check
      _
    $region35: #{tpu_custom_call.1} parent=1 // pred_check_branch
      %63 = sbr.rel (0) target = $region37
    $region36: #{tpu_custom_call.1} parent=1 // pred_region
      %64 = dma.done [#allocation6], 8192
    $region37: #{tpu_custom_call.1} parent=1 // pred_fallthru
      _
    // Predicated region
    $region38: #{tpu_custom_call.1} parent=1 // pred_check
      _
    $region39: #{tpu_custom_call.1} parent=1 // pred_check_branch
      %66 = sbr.rel (0) target = $region41
    $region40: #{tpu_custom_call.1} parent=1 // pred_region
      %67 = dma.done [#allocation6], 2048
    $region41: #{tpu_custom_call.1} parent=1 // pred_fallthru
      _
    %v69 = vld [vmem:[#allocation2] sm:$0xff]
    %v70 = vld [vmem:[#allocation2 + $0x8] sm:$0xff]
    %v71 = vld [vmem:[#allocation2 + $0x10] sm:$0xff]
    %v72 = vld [vmem:[#allocation2 + $0x18] sm:$0xff]
    %v73 = vld [vmem:[#allocation2 + $0x20] sm:$0xff]
    %v74 = vld [vmem:[#allocation2 + $0x28] sm:$0xff]
    %v75 = vld [vmem:[#allocation2 + $0x30] sm:$0xff]
    %v76 = vld [vmem:[#allocation2 + $0x38] sm:$0xff]
    %v77 = vld [vmem:[#allocation2 + $0x40] sm:$0xff]
    %v78 = vld [vmem:[#allocation2 + $0x48] sm:$0xff]
    %v79 = vld [vmem:[#allocation2 + $0x50] sm:$0xff]
    %v80 = vld [vmem:[#allocation2 + $0x58] sm:$0xff]
    %v81 = vld [vmem:[#allocation2 + $0x60] sm:$0xff]
    %v82 = vld [vmem:[#allocation2 + $0x68] sm:$0xff]
    %v83 = vld [vmem:[#allocation2 + $0x70] sm:$0xff]
    %v84 = vld [vmem:[#allocation2 + $0x78] sm:$0xff]
    %v85 = vld [vmem:[#allocation2 + $0x80] sm:$0xff]
    %v86 = vld [vmem:[#allocation2 + $0x88] sm:$0xff]
    %v87 = vld [vmem:[#allocation2 + $0x90] sm:$0xff]
    %v88 = vld [vmem:[#allocation2 + $0x98] sm:$0xff]
    %v89 = vld [vmem:[#allocation2 + $0xa0] sm:$0xff]
    %v90 = vld [vmem:[#allocation2 + $0xa8] sm:$0xff]
    %v91 = vld [vmem:[#allocation2 + $0xb0] sm:$0xff]
    %v92 = vld [vmem:[#allocation2 + $0xb8] sm:$0xff]
    %v93 = vld [vmem:[#allocation2 + $0xc0] sm:$0xff]
    %v94 = vld [vmem:[#allocation2 + $0xc8] sm:$0xff]
    %v95 = vld [vmem:[#allocation2 + $0xd0] sm:$0xff]
    %v96 = vld [vmem:[#allocation2 + $0xd8] sm:$0xff]
    %v97 = vld [vmem:[#allocation2 + $0xe0] sm:$0xff]
    %v98 = vld [vmem:[#allocation2 + $0xe8] sm:$0xff]
    %v99 = vld [vmem:[#allocation2 + $0xf0] sm:$0xff]
    %v100 = vld [vmem:[#allocation2 + $0xf8] sm:$0xff]
    %v101 = vld [vmem:[#allocation2 + $0x100] sm:$0xff]
    %v102 = vld [vmem:[#allocation2 + $0x108] sm:$0xff]
    %v103 = vld [vmem:[#allocation2 + $0x110] sm:$0xff]
    %v104 = vld [vmem:[#allocation2 + $0x118] sm:$0xff]
    %v105 = vld [vmem:[#allocation2 + $0x120] sm:$0xff]
    %v106 = vld [vmem:[#allocation2 + $0x128] sm:$0xff]
    %v107 = vld [vmem:[#allocation2 + $0x130] sm:$0xff]
    %v108 = vld [vmem:[#allocation2 + $0x138] sm:$0xff]
    %v109 = vld [vmem:[#allocation2 + $0x140] sm:$0xff]
    %v110 = vld [vmem:[#allocation2 + $0x148] sm:$0xff]
    %v111 = vld [vmem:[#allocation2 + $0x150] sm:$0xff]
    %v112 = vld [vmem:[#allocation2 + $0x158] sm:$0xff]
    %v113 = vld [vmem:[#allocation2 + $0x160] sm:$0xff]
    %v114 = vld [vmem:[#allocation2 + $0x168] sm:$0xff]
    %v115 = vld [vmem:[#allocation2 + $0x170] sm:$0xff]
    %v116 = vld [vmem:[#allocation2 + $0x178] sm:$0xff]
    %v117 = vld [vmem:[#allocation2 + $0x180] sm:$0xff]
    %v118 = vld [vmem:[#allocation2 + $0x188] sm:$0xff]
    %v119 = vld [vmem:[#allocation2 + $0x190] sm:$0xff]
    %v120 = vld [vmem:[#allocation2 + $0x198] sm:$0xff]
    %v121 = vld [vmem:[#allocation2 + $0x1a0] sm:$0xff]
    %v122 = vld [vmem:[#allocation2 + $0x1a8] sm:$0xff]
    %v123 = vld [vmem:[#allocation2 + $0x1b0] sm:$0xff]
    %v124 = vld [vmem:[#allocation2 + $0x1b8] sm:$0xff]
    %v125 = vld [vmem:[#allocation2 + $0x1c0] sm:$0xff]
    %v126 = vld [vmem:[#allocation2 + $0x1c8] sm:$0xff]
    %v127 = vld [vmem:[#allocation2 + $0x1d0] sm:$0xff]
    %v128 = vld [vmem:[#allocation2 + $0x1d8] sm:$0xff]
    %v129 = vld [vmem:[#allocation2 + $0x1e0] sm:$0xff]
    %v130 = vld [vmem:[#allocation2 + $0x1e8] sm:$0xff]
    %v131 = vld [vmem:[#allocation2 + $0x1f0] sm:$0xff]
    %v132 = vld [vmem:[#allocation2 + $0x1f8] sm:$0xff]
    %v133 = vld [vmem:[#allocation5] sm:$0xff]
    %v134 = vld [vmem:[#allocation5 + $0x8] sm:$0xff]
    %v135 = vld [vmem:[#allocation5 + $0x10] sm:$0xff]
    %v136 = vld [vmem:[#allocation5 + $0x18] sm:$0xff]
    %v137 = vld [vmem:[#allocation5 + $0x20] sm:$0xff]
    %v138 = vld [vmem:[#allocation5 + $0x28] sm:$0xff]
    %v139 = vld [vmem:[#allocation5 + $0x30] sm:$0xff]
    %v140 = vld [vmem:[#allocation5 + $0x38] sm:$0xff]
    %v141 = vld [vmem:[#allocation5 + $0x40] sm:$0xff]
    %v142 = vld [vmem:[#allocation5 + $0x48] sm:$0xff]
    %v143 = vld [vmem:[#allocation5 + $0x50] sm:$0xff]
    %v144 = vld [vmem:[#allocation5 + $0x58] sm:$0xff]
    %v145 = vld [vmem:[#allocation5 + $0x60] sm:$0xff]
    %v146 = vld [vmem:[#allocation5 + $0x68] sm:$0xff]
    %v147 = vld [vmem:[#allocation5 + $0x70] sm:$0xff]
    %v148 = vld [vmem:[#allocation5 + $0x78] sm:$0xff]
    %v149 = vld [vmem:[#allocation5 + $0x80] sm:$0xff]
    %v150 = vld [vmem:[#allocation5 + $0x88] sm:$0xff]
    %v151 = vld [vmem:[#allocation5 + $0x90] sm:$0xff]
    %v152 = vld [vmem:[#allocation5 + $0x98] sm:$0xff]
    %v153 = vld [vmem:[#allocation5 + $0xa0] sm:$0xff]
    %v154 = vld [vmem:[#allocation5 + $0xa8] sm:$0xff]
    %v155 = vld [vmem:[#allocation5 + $0xb0] sm:$0xff]
    %v156 = vld [vmem:[#allocation5 + $0xb8] sm:$0xff]
    %v157 = vld [vmem:[#allocation5 + $0xc0] sm:$0xff]
    %v158 = vld [vmem:[#allocation5 + $0xc8] sm:$0xff]
    %v159 = vld [vmem:[#allocation5 + $0xd0] sm:$0xff]
    %v160 = vld [vmem:[#allocation5 + $0xd8] sm:$0xff]
    %v161 = vld [vmem:[#allocation5 + $0xe0] sm:$0xff]
    %v162 = vld [vmem:[#allocation5 + $0xe8] sm:$0xff]
    %v163 = vld [vmem:[#allocation5 + $0xf0] sm:$0xff]
    %v164 = vld [vmem:[#allocation5 + $0xf8] sm:$0xff]
    %v165 = vld [vmem:[#allocation5 + $0x100] sm:$0xff]
    %v166 = vld [vmem:[#allocation5 + $0x108] sm:$0xff]
    %v167 = vld [vmem:[#allocation5 + $0x110] sm:$0xff]
    %v168 = vld [vmem:[#allocation5 + $0x118] sm:$0xff]
    %v169 = vld [vmem:[#allocation5 + $0x120] sm:$0xff]
    %v170 = vld [vmem:[#allocation5 + $0x128] sm:$0xff]
    %v171 = vld [vmem:[#allocation5 + $0x130] sm:$0xff]
    %v172 = vld [vmem:[#allocation5 + $0x138] sm:$0xff]
    %v173 = vld [vmem:[#allocation5 + $0x140] sm:$0xff]
    %v174 = vld [vmem:[#allocation5 + $0x148] sm:$0xff]
    %v175 = vld [vmem:[#allocation5 + $0x150] sm:$0xff]
    %v176 = vld [vmem:[#allocation5 + $0x158] sm:$0xff]
    %v177 = vld [vmem:[#allocation5 + $0x160] sm:$0xff]
    %v178 = vld [vmem:[#allocation5 + $0x168] sm:$0xff]
    %v179 = vld [vmem:[#allocation5 + $0x170] sm:$0xff]
    %v180 = vld [vmem:[#allocation5 + $0x178] sm:$0xff]
    %v181 = vld [vmem:[#allocation5 + $0x180] sm:$0xff]
    %v182 = vld [vmem:[#allocation5 + $0x188] sm:$0xff]
    %v183 = vld [vmem:[#allocation5 + $0x190] sm:$0xff]
    %v184 = vld [vmem:[#allocation5 + $0x198] sm:$0xff]
    %v185 = vld [vmem:[#allocation5 + $0x1a0] sm:$0xff]
    %v186 = vld [vmem:[#allocation5 + $0x1a8] sm:$0xff]
    %v187 = vld [vmem:[#allocation5 + $0x1b0] sm:$0xff]
    %v188 = vld [vmem:[#allocation5 + $0x1b8] sm:$0xff]
    %v189 = vld [vmem:[#allocation5 + $0x1c0] sm:$0xff]
    %v190 = vld [vmem:[#allocation5 + $0x1c8] sm:$0xff]
    %v191 = vld [vmem:[#allocation5 + $0x1d0] sm:$0xff]
    %v192 = vld [vmem:[#allocation5 + $0x1d8] sm:$0xff]
    %v193 = vld [vmem:[#allocation5 + $0x1e0] sm:$0xff]
    %v194 = vld [vmem:[#allocation5 + $0x1e8] sm:$0xff]
    %v195 = vld [vmem:[#allocation5 + $0x1f0] sm:$0xff]
    %v196 = vld [vmem:[#allocation5 + $0x1f8] sm:$0xff]
    %v197 = vld [vmem:[%s2] sm:$0x3]
    %v199 = vlaneseq
    %v200 = vshrl.u32 %v199, 7
    %v201 = vsub.s32 0, %v200
    %v202 = vrot.slane %v197, %v201
    %v203 = vlaneseq
    %v204 = vshrl.u32 %v203, 7
    %v205 = vsub.s32 1, %v204
    %v206 = vrot.slane %v197, %v205
    %v273 = vunpack.c.l.b16 %v69
    %v274 = vunpack.c.h.b16 %v69
    %v275 = vunpack.c.l.b16 %v70
    %v276 = vunpack.c.h.b16 %v70
    %v277 = vunpack.c.l.b16 %v71
    %v278 = vunpack.c.h.b16 %v71
    %v279 = vunpack.c.l.b16 %v72
    %v280 = vunpack.c.h.b16 %v72
    %v281 = vunpack.c.l.b16 %v73
    %v282 = vunpack.c.h.b16 %v73
    %v283 = vunpack.c.l.b16 %v74
    %v284 = vunpack.c.h.b16 %v74
    %v285 = vunpack.c.l.b16 %v75
    %v286 = vunpack.c.h.b16 %v75
    %v287 = vunpack.c.l.b16 %v76
    %v288 = vunpack.c.h.b16 %v76
    %v289 = vunpack.c.l.b16 %v77
    %v290 = vunpack.c.h.b16 %v77
    %v291 = vunpack.c.l.b16 %v78
    %v292 = vunpack.c.h.b16 %v78
    %v293 = vunpack.c.l.b16 %v79
    %v294 = vunpack.c.h.b16 %v79
    %v295 = vunpack.c.l.b16 %v80
    %v296 = vunpack.c.h.b16 %v80
    %v297 = vunpack.c.l.b16 %v81
    %v298 = vunpack.c.h.b16 %v81
    %v299 = vunpack.c.l.b16 %v82
    %v300 = vunpack.c.h.b16 %v82
    %v301 = vunpack.c.l.b16 %v83
    %v302 = vunpack.c.h.b16 %v83
    %v303 = vunpack.c.l.b16 %v84
    %v304 = vunpack.c.h.b16 %v84
    %v305 = vunpack.c.l.b16 %v85
    %v306 = vunpack.c.h.b16 %v85
    %v307 = vunpack.c.l.b16 %v86
    %v308 = vunpack.c.h.b16 %v86
    %v309 = vunpack.c.l.b16 %v87
    %v310 = vunpack.c.h.b16 %v87
    %v311 = vunpack.c.l.b16 %v88
    %v312 = vunpack.c.h.b16 %v88
    %v313 = vunpack.c.l.b16 %v89
    %v314 = vunpack.c.h.b16 %v89
    %v315 = vunpack.c.l.b16 %v90
    %v316 = vunpack.c.h.b16 %v90
    %v317 = vunpack.c.l.b16 %v91
    %v318 = vunpack.c.h.b16 %v91
    %v319 = vunpack.c.l.b16 %v92
    %v320 = vunpack.c.h.b16 %v92
    %v321 = vunpack.c.l.b16 %v93
    %v322 = vunpack.c.h.b16 %v93
    %v323 = vunpack.c.l.b16 %v94
    %v324 = vunpack.c.h.b16 %v94
    %v325 = vunpack.c.l.b16 %v95
    %v326 = vunpack.c.h.b16 %v95
    %v327 = vunpack.c.l.b16 %v96
    %v328 = vunpack.c.h.b16 %v96
    %v329 = vunpack.c.l.b16 %v97
    %v330 = vunpack.c.h.b16 %v97
    %v331 = vunpack.c.l.b16 %v98
    %v332 = vunpack.c.h.b16 %v98
    %v333 = vunpack.c.l.b16 %v99
    %v334 = vunpack.c.h.b16 %v99
    %v335 = vunpack.c.l.b16 %v100
    %v336 = vunpack.c.h.b16 %v100
    %v337 = vunpack.c.l.b16 %v101
    %v338 = vunpack.c.h.b16 %v101
    %v339 = vunpack.c.l.b16 %v102
    %v340 = vunpack.c.h.b16 %v102
    %v341 = vunpack.c.l.b16 %v103
    %v342 = vunpack.c.h.b16 %v103
    %v343 = vunpack.c.l.b16 %v104
    %v344 = vunpack.c.h.b16 %v104
    %v345 = vunpack.c.l.b16 %v105
    %v346 = vunpack.c.h.b16 %v105
    %v347 = vunpack.c.l.b16 %v106
    %v348 = vunpack.c.h.b16 %v106
    %v349 = vunpack.c.l.b16 %v107
    %v350 = vunpack.c.h.b16 %v107
    %v351 = vunpack.c.l.b16 %v108
    %v352 = vunpack.c.h.b16 %v108
    %v353 = vunpack.c.l.b16 %v109
    %v354 = vunpack.c.h.b16 %v109
    %v355 = vunpack.c.l.b16 %v110
    %v356 = vunpack.c.h.b16 %v110
    %v357 = vunpack.c.l.b16 %v111
    %v358 = vunpack.c.h.b16 %v111
    %v359 = vunpack.c.l.b16 %v112
    %v360 = vunpack.c.h.b16 %v112
    %v361 = vunpack.c.l.b16 %v113
    %v362 = vunpack.c.h.b16 %v113
    %v363 = vunpack.c.l.b16 %v114
    %v364 = vunpack.c.h.b16 %v114
    %v365 = vunpack.c.l.b16 %v115
    %v366 = vunpack.c.h.b16 %v115
    %v367 = vunpack.c.l.b16 %v116
    %v368 = vunpack.c.h.b16 %v116
    %v369 = vunpack.c.l.b16 %v117
    %v370 = vunpack.c.h.b16 %v117
    %v371 = vunpack.c.l.b16 %v118
    %v372 = vunpack.c.h.b16 %v118
    %v373 = vunpack.c.l.b16 %v119
    %v374 = vunpack.c.h.b16 %v119
    %v375 = vunpack.c.l.b16 %v120
    %v376 = vunpack.c.h.b16 %v120
    %v377 = vunpack.c.l.b16 %v121
    %v378 = vunpack.c.h.b16 %v121
    %v379 = vunpack.c.l.b16 %v122
    %v380 = vunpack.c.h.b16 %v122
    %v381 = vunpack.c.l.b16 %v123
    %v382 = vunpack.c.h.b16 %v123
    %v383 = vunpack.c.l.b16 %v124
    %v384 = vunpack.c.h.b16 %v124
    %v385 = vunpack.c.l.b16 %v125
    %v386 = vunpack.c.h.b16 %v125
    %v387 = vunpack.c.l.b16 %v126
    %v388 = vunpack.c.h.b16 %v126
    %v389 = vunpack.c.l.b16 %v127
    %v390 = vunpack.c.h.b16 %v127
    %v391 = vunpack.c.l.b16 %v128
    %v392 = vunpack.c.h.b16 %v128
    %v393 = vunpack.c.l.b16 %v129
    %v394 = vunpack.c.h.b16 %v129
    %v395 = vunpack.c.l.b16 %v130
    %v396 = vunpack.c.h.b16 %v130
    %v397 = vunpack.c.l.b16 %v131
    %v398 = vunpack.c.h.b16 %v131
    %v399 = vunpack.c.l.b16 %v132
    %v400 = vunpack.c.h.b16 %v132
    %v401 = vpack.c.b16 %v277, %v273
    %v402 = vpack.c.b16 %v278, %v274
    %v403 = vpack.c.b16 %v279, %v275
    %v404 = vpack.c.b16 %v280, %v276
    %v405 = vpack.c.b16 %v285, %v281
    %v406 = vpack.c.b16 %v286, %v282
    %v407 = vpack.c.b16 %v287, %v283
    %v408 = vpack.c.b16 %v288, %v284
    %v409 = vpack.c.b16 %v293, %v289
    %v410 = vpack.c.b16 %v294, %v290
    %v411 = vpack.c.b16 %v295, %v291
    %v412 = vpack.c.b16 %v296, %v292
    %v413 = vpack.c.b16 %v301, %v297
    %v414 = vpack.c.b16 %v302, %v298
    %v415 = vpack.c.b16 %v303, %v299
    %v416 = vpack.c.b16 %v304, %v300
    %v417 = vpack.c.b16 %v309, %v305
    %v418 = vpack.c.b16 %v310, %v306
    %v419 = vpack.c.b16 %v311, %v307
    %v420 = vpack.c.b16 %v312, %v308
    %v421 = vpack.c.b16 %v317, %v313
    %v422 = vpack.c.b16 %v318, %v314
    %v423 = vpack.c.b16 %v319, %v315
    %v424 = vpack.c.b16 %v320, %v316
    %v425 = vpack.c.b16 %v325, %v321
    %v426 = vpack.c.b16 %v326, %v322
    %v427 = vpack.c.b16 %v327, %v323
    %v428 = vpack.c.b16 %v328, %v324
    %v429 = vpack.c.b16 %v333, %v329
    %v430 = vpack.c.b16 %v334, %v330
    %v431 = vpack.c.b16 %v335, %v331
    %v432 = vpack.c.b16 %v336, %v332
    %v433 = vpack.c.b16 %v341, %v337
    %v434 = vpack.c.b16 %v342, %v338
    %v435 = vpack.c.b16 %v343, %v339
    %v436 = vpack.c.b16 %v344, %v340
    %v437 = vpack.c.b16 %v349, %v345
    %v438 = vpack.c.b16 %v350, %v346
    %v439 = vpack.c.b16 %v351, %v347
    %v440 = vpack.c.b16 %v352, %v348
    %v441 = vpack.c.b16 %v357, %v353
    %v442 = vpack.c.b16 %v358, %v354
    %v443 = vpack.c.b16 %v359, %v355
    %v444 = vpack.c.b16 %v360, %v356
    %v445 = vpack.c.b16 %v365, %v361
    %v446 = vpack.c.b16 %v366, %v362
    %v447 = vpack.c.b16 %v367, %v363
    %v448 = vpack.c.b16 %v368, %v364
    %v449 = vpack.c.b16 %v373, %v369
    %v450 = vpack.c.b16 %v374, %v370
    %v451 = vpack.c.b16 %v375, %v371
    %v452 = vpack.c.b16 %v376, %v372
    %v453 = vpack.c.b16 %v381, %v377
    %v454 = vpack.c.b16 %v382, %v378
    %v455 = vpack.c.b16 %v383, %v379
    %v456 = vpack.c.b16 %v384, %v380
    %v457 = vpack.c.b16 %v389, %v385
    %v458 = vpack.c.b16 %v390, %v386
    %v459 = vpack.c.b16 %v391, %v387
    %v460 = vpack.c.b16 %v392, %v388
    %v461 = vpack.c.b16 %v397, %v393
    %v462 = vpack.c.b16 %v398, %v394
    %v463 = vpack.c.b16 %v399, %v395
    %v464 = vpack.c.b16 %v400, %v396
    %v593 = vunpack.c.l.b16 %v133
    %v594 = vunpack.c.h.b16 %v133
    %v595 = vunpack.c.l.b16 %v134
    %v596 = vunpack.c.h.b16 %v134
    %v597 = vunpack.c.l.b16 %v135
    %v598 = vunpack.c.h.b16 %v135
    %v599 = vunpack.c.l.b16 %v136
    %v600 = vunpack.c.h.b16 %v136
    %v601 = vunpack.c.l.b16 %v137
    %v602 = vunpack.c.h.b16 %v137
    %v603 = vunpack.c.l.b16 %v138
    %v604 = vunpack.c.h.b16 %v138
    %v605 = vunpack.c.l.b16 %v139
    %v606 = vunpack.c.h.b16 %v139
    %v607 = vunpack.c.l.b16 %v140
    %v608 = vunpack.c.h.b16 %v140
    %v609 = vunpack.c.l.b16 %v141
    %v610 = vunpack.c.h.b16 %v141
    %v611 = vunpack.c.l.b16 %v142
    %v612 = vunpack.c.h.b16 %v142
    %v613 = vunpack.c.l.b16 %v143
    %v614 = vunpack.c.h.b16 %v143
    %v615 = vunpack.c.l.b16 %v144
    %v616 = vunpack.c.h.b16 %v144
    %v617 = vunpack.c.l.b16 %v145
    %v618 = vunpack.c.h.b16 %v145
    %v619 = vunpack.c.l.b16 %v146
    %v620 = vunpack.c.h.b16 %v146
    %v621 = vunpack.c.l.b16 %v147
    %v622 = vunpack.c.h.b16 %v147
    %v623 = vunpack.c.l.b16 %v148
    %v624 = vunpack.c.h.b16 %v148
    %v625 = vunpack.c.l.b16 %v149
    %v626 = vunpack.c.h.b16 %v149
    %v627 = vunpack.c.l.b16 %v150
    %v628 = vunpack.c.h.b16 %v150
    %v629 = vunpack.c.l.b16 %v151
    %v630 = vunpack.c.h.b16 %v151
    %v631 = vunpack.c.l.b16 %v152
    %v632 = vunpack.c.h.b16 %v152
    %v633 = vunpack.c.l.b16 %v153
    %v634 = vunpack.c.h.b16 %v153
    %v635 = vunpack.c.l.b16 %v154
    %v636 = vunpack.c.h.b16 %v154
    %v637 = vunpack.c.l.b16 %v155
    %v638 = vunpack.c.h.b16 %v155
    %v639 = vunpack.c.l.b16 %v156
    %v640 = vunpack.c.h.b16 %v156
    %v641 = vunpack.c.l.b16 %v157
    %v642 = vunpack.c.h.b16 %v157
    %v643 = vunpack.c.l.b16 %v158
    %v644 = vunpack.c.h.b16 %v158
    %v645 = vunpack.c.l.b16 %v159
    %v646 = vunpack.c.h.b16 %v159
    %v647 = vunpack.c.l.b16 %v160
    %v648 = vunpack.c.h.b16 %v160
    %v649 = vunpack.c.l.b16 %v161
    %v650 = vunpack.c.h.b16 %v161
    %v651 = vunpack.c.l.b16 %v162
    %v652 = vunpack.c.h.b16 %v162
    %v653 = vunpack.c.l.b16 %v163
    %v654 = vunpack.c.h.b16 %v163
    %v655 = vunpack.c.l.b16 %v164
    %v656 = vunpack.c.h.b16 %v164
    %v657 = vunpack.c.l.b16 %v165
    %v658 = vunpack.c.h.b16 %v165
    %v659 = vunpack.c.l.b16 %v166
    %v660 = vunpack.c.h.b16 %v166
    %v661 = vunpack.c.l.b16 %v167
    %v662 = vunpack.c.h.b16 %v167
    %v663 = vunpack.c.l.b16 %v168
    %v664 = vunpack.c.h.b16 %v168
    %v665 = vunpack.c.l.b16 %v169
    %v666 = vunpack.c.h.b16 %v169
    %v667 = vunpack.c.l.b16 %v170
    %v668 = vunpack.c.h.b16 %v170
    %v669 = vunpack.c.l.b16 %v171
    %v670 = vunpack.c.h.b16 %v171
    %v671 = vunpack.c.l.b16 %v172
    %v672 = vunpack.c.h.b16 %v172
    %v673 = vunpack.c.l.b16 %v173
    %v674 = vunpack.c.h.b16 %v173
    %v675 = vunpack.c.l.b16 %v174
    %v676 = vunpack.c.h.b16 %v174
    %v677 = vunpack.c.l.b16 %v175
    %v678 = vunpack.c.h.b16 %v175
    %v679 = vunpack.c.l.b16 %v176
    %v680 = vunpack.c.h.b16 %v176
    %v681 = vunpack.c.l.b16 %v177
    %v682 = vunpack.c.h.b16 %v177
    %v683 = vunpack.c.l.b16 %v178
    %v684 = vunpack.c.h.b16 %v178
    %v685 = vunpack.c.l.b16 %v179
    %v686 = vunpack.c.h.b16 %v179
    %v687 = vunpack.c.l.b16 %v180
    %v688 = vunpack.c.h.b16 %v180
    %v689 = vunpack.c.l.b16 %v181
    %v690 = vunpack.c.h.b16 %v181
    %v691 = vunpack.c.l.b16 %v182
    %v692 = vunpack.c.h.b16 %v182
    %v693 = vunpack.c.l.b16 %v183
    %v694 = vunpack.c.h.b16 %v183
    %v695 = vunpack.c.l.b16 %v184
    %v696 = vunpack.c.h.b16 %v184
    %v697 = vunpack.c.l.b16 %v185
    %v698 = vunpack.c.h.b16 %v185
    %v699 = vunpack.c.l.b16 %v186
    %v700 = vunpack.c.h.b16 %v186
    %v701 = vunpack.c.l.b16 %v187
    %v702 = vunpack.c.h.b16 %v187
    %v703 = vunpack.c.l.b16 %v188
    %v704 = vunpack.c.h.b16 %v188
    %v705 = vunpack.c.l.b16 %v189
    %v706 = vunpack.c.h.b16 %v189
    %v707 = vunpack.c.l.b16 %v190
    %v708 = vunpack.c.h.b16 %v190
    %v709 = vunpack.c.l.b16 %v191
    %v710 = vunpack.c.h.b16 %v191
    %v711 = vunpack.c.l.b16 %v192
    %v712 = vunpack.c.h.b16 %v192
    %v713 = vunpack.c.l.b16 %v193
    %v714 = vunpack.c.h.b16 %v193
    %v715 = vunpack.c.l.b16 %v194
    %v716 = vunpack.c.h.b16 %v194
    %v717 = vunpack.c.l.b16 %v195
    %v718 = vunpack.c.h.b16 %v195
    %v719 = vunpack.c.l.b16 %v196
    %v720 = vunpack.c.h.b16 %v196
    %v721 = vpack.c.b16 %v595, %v593
    %v722 = vpack.c.b16 %v596, %v594
    %v723 = vpack.c.b16 %v599, %v597
    %v724 = vpack.c.b16 %v600, %v598
    %v725 = vpack.c.b16 %v603, %v601
    %v726 = vpack.c.b16 %v604, %v602
    %v727 = vpack.c.b16 %v607, %v605
    %v728 = vpack.c.b16 %v608, %v606
    %v729 = vpack.c.b16 %v611, %v609
    %v730 = vpack.c.b16 %v612, %v610
    %v731 = vpack.c.b16 %v615, %v613
    %v732 = vpack.c.b16 %v616, %v614
    %v733 = vpack.c.b16 %v619, %v617
    %v734 = vpack.c.b16 %v620, %v618
    %v735 = vpack.c.b16 %v623, %v621
    %v736 = vpack.c.b16 %v624, %v622
    %v737 = vpack.c.b16 %v627, %v625
    %v738 = vpack.c.b16 %v628, %v626
    %v739 = vpack.c.b16 %v631, %v629
    %v740 = vpack.c.b16 %v632, %v630
    %v741 = vpack.c.b16 %v635, %v633
    %v742 = vpack.c.b16 %v636, %v634
    %v743 = vpack.c.b16 %v639, %v637
    %v744 = vpack.c.b16 %v640, %v638
    %v745 = vpack.c.b16 %v643, %v641
    %v746 = vpack.c.b16 %v644, %v642
    %v747 = vpack.c.b16 %v647, %v645
    %v748 = vpack.c.b16 %v648, %v646
    %v749 = vpack.c.b16 %v651, %v649
    %v750 = vpack.c.b16 %v652, %v650
    %v751 = vpack.c.b16 %v655, %v653
    %v752 = vpack.c.b16 %v656, %v654
    %v753 = vpack.c.b16 %v659, %v657
    %v754 = vpack.c.b16 %v660, %v658
    %v755 = vpack.c.b16 %v663, %v661
    %v756 = vpack.c.b16 %v664, %v662
    %v757 = vpack.c.b16 %v667, %v665
    %v758 = vpack.c.b16 %v668, %v666
    %v759 = vpack.c.b16 %v671, %v669
    %v760 = vpack.c.b16 %v672, %v670
    %v761 = vpack.c.b16 %v675, %v673
    %v762 = vpack.c.b16 %v676, %v674
    %v763 = vpack.c.b16 %v679, %v677
    %v764 = vpack.c.b16 %v680, %v678
    %v765 = vpack.c.b16 %v683, %v681
    %v766 = vpack.c.b16 %v684, %v682
    %v767 = vpack.c.b16 %v687, %v685
    %v768 = vpack.c.b16 %v688, %v686
    %v769 = vpack.c.b16 %v691, %v689
    %v770 = vpack.c.b16 %v692, %v690
    %v771 = vpack.c.b16 %v695, %v693
    %v772 = vpack.c.b16 %v696, %v694
    %v773 = vpack.c.b16 %v699, %v697
    %v774 = vpack.c.b16 %v700, %v698
    %v775 = vpack.c.b16 %v703, %v701
    %v776 = vpack.c.b16 %v704, %v702
    %v777 = vpack.c.b16 %v707, %v705
    %v778 = vpack.c.b16 %v708, %v706
    %v779 = vpack.c.b16 %v711, %v709
    %v780 = vpack.c.b16 %v712, %v710
    %v781 = vpack.c.b16 %v715, %v713
    %v782 = vpack.c.b16 %v716, %v714
    %v783 = vpack.c.b16 %v719, %v717
    %v784 = vpack.c.b16 %v720, %v718
    %849 = vmatprep.subr.bf16.mxu0 %v722
    %850 = vmatpush1.bf16.msra.mxu0 %v721
    %851 = vmatprep.subr.bf16.mxu0 %v724
    %852 = vmatpush1.bf16.msra.mxu0 %v723
    %853 = vmatprep.subr.bf16.mxu0 %v726
    %854 = vmatpush1.bf16.msra.mxu0 %v725
    %855 = vmatprep.subr.bf16.mxu0 %v728
    %856 = vmatpush1.bf16.msra.mxu0 %v727
    %857 = vmatprep.subr.bf16.mxu0 %v730
    %858 = vmatpush1.bf16.msra.mxu0 %v729
    %859 = vmatprep.subr.bf16.mxu0 %v732
    %860 = vmatpush1.bf16.msra.mxu0 %v731
    %861 = vmatprep.subr.bf16.mxu0 %v734
    %862 = vmatpush1.bf16.msra.mxu0 %v733
    %863 = vmatprep.subr.bf16.mxu0 %v736
    %864 = vmatpush1.bf16.msra.mxu0 %v735
    %865 = vmatprep.subr.bf16.mxu0 %v738
    %866 = vmatpush1.bf16.msra.mxu0 %v737
    %867 = vmatprep.subr.bf16.mxu0 %v740
    %868 = vmatpush1.bf16.msra.mxu0 %v739
    %869 = vmatprep.subr.bf16.mxu0 %v742
    %870 = vmatpush1.bf16.msra.mxu0 %v741
    %871 = vmatprep.subr.bf16.mxu0 %v744
    %872 = vmatpush1.bf16.msra.mxu0 %v743
    %873 = vmatprep.subr.bf16.mxu0 %v746
    %874 = vmatpush1.bf16.msra.mxu0 %v745
    %875 = vmatprep.subr.bf16.mxu0 %v748
    %876 = vmatpush1.bf16.msra.mxu0 %v747
    %877 = vmatprep.subr.bf16.mxu0 %v750
    %878 = vmatpush1.bf16.msra.mxu0 %v749
    %879 = vmatprep.subr.bf16.mxu0 %v752
    %880 = vmatpush1.bf16.msra.mxu0 %v751
    %881 = vmatprep.mubr.bf16.mxu0 %v402
    %882 = vmatmul.mubr.bf16.gmra.mrb[0].mxu0 %v401
    %v883 = vpop.f32.mrb[0].mxu0
    %v884 = vadd.f32 %v202, %v883
    %v885 = vpop.f32.mrb[0].mxu0
    %v886 = vadd.f32 %v206, %v885
    %v887 = vpop.f32.mrb[0].mxu0
    %v888 = vadd.f32 %v202, %v887
    %v889 = vpop.f32.mrb[0].mxu0
    %v890 = vadd.f32 %v206, %v889
    %891 = vmatprep.mubr.bf16.mxu0 %v406
    %892 = vmatmul.mubr.bf16.gmra.mrb[0].mxu0 %v405
    %v893 = vpop.f32.mrb[0].mxu0
    %v894 = vadd.f32 %v202, %v893
    %v895 = vpop.f32.mrb[0].mxu0
    %v896 = vadd.f32 %v206, %v895
    %v897 = vpop.f32.mrb[0].mxu0
    %v898 = vadd.f32 %v202, %v897
    %v899 = vpop.f32.mrb[0].mxu0
    %v900 = vadd.f32 %v206, %v899
    %901 = vmatprep.mubr.bf16.mxu0 %v410
    %902 = vmatmul.mubr.bf16.gmra.mrb[0].mxu0 %v409
    %v903 = vpop.f32.mrb[0].mxu0
    %v904 = vadd.f32 %v202, %v903
    %v905 = vpop.f32.mrb[0].mxu0
    %v906 = vadd.f32 %v206, %v905
    %v907 = vpop.f32.mrb[0].mxu0
    %v908 = vadd.f32 %v202, %v907
    %v909 = vpop.f32.mrb[0].mxu0
    %v910 = vadd.f32 %v206, %v909
    %911 = vmatprep.mubr.bf16.mxu0 %v414
    %912 = vmatmul.mubr.bf16.gmra.mrb[0].mxu0 %v413
    %v913 = vpop.f32.mrb[0].mxu0
    %v914 = vadd.f32 %v202, %v913
    %v915 = vpop.f32.mrb[0].mxu0
    %v916 = vadd.f32 %v206, %v915
    %v917 = vpop.f32.mrb[0].mxu0
    %v918 = vadd.f32 %v202, %v917
    %v919 = vpop.f32.mrb[0].mxu0
    %v920 = vadd.f32 %v206, %v919
    %921 = vmatprep.mubr.bf16.mxu0 %v418
    %922 = vmatmul.mubr.bf16.gmra.mrb[0].mxu0 %v417
    %v923 = vpop.f32.mrb[0].mxu0
    %v924 = vadd.f32 %v202, %v923
    %v925 = vpop.f32.mrb[0].mxu0
    %v926 = vadd.f32 %v206, %v925
    %v927 = vpop.f32.mrb[0].mxu0
    %v928 = vadd.f32 %v202, %v927
    %v929 = vpop.f32.mrb[0].mxu0
    %v930 = vadd.f32 %v206, %v929
    %931 = vmatprep.mubr.bf16.mxu0 %v422
    %932 = vmatmul.mubr.bf16.gmra.mrb[0].mxu0 %v421
    %v933 = vpop.f32.mrb[0].mxu0
    %v934 = vadd.f32 %v202, %v933
    %v935 = vpop.f32.mrb[0].mxu0
    %v936 = vadd.f32 %v206, %v935
    %v937 = vpop.f32.mrb[0].mxu0
    %v938 = vadd.f32 %v202, %v937
    %v939 = vpop.f32.mrb[0].mxu0
    %v940 = vadd.f32 %v206, %v939
    %941 = vmatprep.mubr.bf16.mxu0 %v426
    %942 = vmatmul.mubr.bf16.gmra.mrb[0].mxu0 %v425
    %v943 = vpop.f32.mrb[0].mxu0
    %v944 = vadd.f32 %v202, %v943
    %v945 = vpop.f32.mrb[0].mxu0
    %v946 = vadd.f32 %v206, %v945
    %v947 = vpop.f32.mrb[0].mxu0
    %v948 = vadd.f32 %v202, %v947
    %v949 = vpop.f32.mrb[0].mxu0
    %v950 = vadd.f32 %v206, %v949
    %951 = vmatprep.mubr.bf16.mxu0 %v430
    %952 = vmatmul.mubr.bf16.gmra.mrb[0].mxu0 %v429
    %v953 = vpop.f32.mrb[0].mxu0
    %v954 = vadd.f32 %v202, %v953
    %v955 = vpop.f32.mrb[0].mxu0
    %v956 = vadd.f32 %v206, %v955
    %v957 = vpop.f32.mrb[0].mxu0
    %v958 = vadd.f32 %v202, %v957
    %v959 = vpop.f32.mrb[0].mxu0
    %v960 = vadd.f32 %v206, %v959
    %961 = vmatprep.mubr.bf16.mxu0 %v434
    %962 = vmatmul.mubr.bf16.gmra.mrb[0].mxu0 %v433
    %v963 = vpop.f32.mrb[0].mxu0
    %v964 = vadd.f32 %v202, %v963
    %v965 = vpop.f32.mrb[0].mxu0
    %v966 = vadd.f32 %v206, %v965
    %v967 = vpop.f32.mrb[0].mxu0
    %v968 = vadd.f32 %v202, %v967
    %v969 = vpop.f32.mrb[0].mxu0
    %v970 = vadd.f32 %v206, %v969
    %971 = vmatprep.mubr.bf16.mxu0 %v438
    %972 = vmatmul.mubr.bf16.gmra.mrb[0].mxu0 %v437
    %v973 = vpop.f32.mrb[0].mxu0
    %v974 = vadd.f32 %v202, %v973
    %v975 = vpop.f32.mrb[0].mxu0
    %v976 = vadd.f32 %v206, %v975
    %v977 = vpop.f32.mrb[0].mxu0
    %v978 = vadd.f32 %v202, %v977
    %v979 = vpop.f32.mrb[0].mxu0
    %v980 = vadd.f32 %v206, %v979
    %981 = vmatprep.mubr.bf16.mxu0 %v442
    %982 = vmatmul.mubr.bf16.gmra.mrb[0].mxu0 %v441
    %v983 = vpop.f32.mrb[0].mxu0
    %v984 = vadd.f32 %v202, %v983
    %v985 = vpop.f32.mrb[0].mxu0
    %v986 = vadd.f32 %v206, %v985
    %v987 = vpop.f32.mrb[0].mxu0
    %v988 = vadd.f32 %v202, %v987
    %v989 = vpop.f32.mrb[0].mxu0
    %v990 = vadd.f32 %v206, %v989
    %991 = vmatprep.mubr.bf16.mxu0 %v446
    %992 = vmatmul.mubr.bf16.gmra.mrb[0].mxu0 %v445
    %v993 = vpop.f32.mrb[0].mxu0
    %v994 = vadd.f32 %v202, %v993
    %v995 = vpop.f32.mrb[0].mxu0
    %v996 = vadd.f32 %v206, %v995
    %v997 = vpop.f32.mrb[0].mxu0
    %v998 = vadd.f32 %v202, %v997
    %v999 = vpop.f32.mrb[0].mxu0
    %v1000 = vadd.f32 %v206, %v999
    %1001 = vmatprep.mubr.bf16.mxu0 %v450
    %1002 = vmatmul.mubr.bf16.gmra.mrb[0].mxu0 %v449
    %v1003 = vpop.f32.mrb[0].mxu0
    %v1004 = vadd.f32 %v202, %v1003
    %v1005 = vpop.f32.mrb[0].mxu0
    %v1006 = vadd.f32 %v206, %v1005
    %v1007 = vpop.f32.mrb[0].mxu0
    %v1008 = vadd.f32 %v202, %v1007
    %v1009 = vpop.f32.mrb[0].mxu0
    %v1010 = vadd.f32 %v206, %v1009
    %1011 = vmatprep.mubr.bf16.mxu0 %v454
    %1012 = vmatmul.mubr.bf16.gmra.mrb[0].mxu0 %v453
    %v1013 = vpop.f32.mrb[0].mxu0
    %v1014 = vadd.f32 %v202, %v1013
    %v1015 = vpop.f32.mrb[0].mxu0
    %v1016 = vadd.f32 %v206, %v1015
    %v1017 = vpop.f32.mrb[0].mxu0
    %v1018 = vadd.f32 %v202, %v1017
    %v1019 = vpop.f32.mrb[0].mxu0
    %v1020 = vadd.f32 %v206, %v1019
    %1021 = vmatprep.mubr.bf16.mxu0 %v458
    %1022 = vmatmul.mubr.bf16.gmra.mrb[0].mxu0 %v457
    %v1023 = vpop.f32.mrb[0].mxu0
    %v1024 = vadd.f32 %v202, %v1023
    %v1025 = vpop.f32.mrb[0].mxu0
    %v1026 = vadd.f32 %v206, %v1025
    %v1027 = vpop.f32.mrb[0].mxu0
    %v1028 = vadd.f32 %v202, %v1027
    %v1029 = vpop.f32.mrb[0].mxu0
    %v1030 = vadd.f32 %v206, %v1029
    %1031 = vmatprep.mubr.bf16.mxu0 %v462
    %1032 = vmatmul.mubr.bf16.gmra.mrb[0].mxu0 %v461
    %v1033 = vpop.f32.mrb[0].mxu0
    %v1034 = vadd.f32 %v202, %v1033
    %v1035 = vpop.f32.mrb[0].mxu0
    %v1036 = vadd.f32 %v206, %v1035
    %v1037 = vpop.f32.mrb[0].mxu0
    %v1038 = vadd.f32 %v202, %v1037
    %v1039 = vpop.f32.mrb[0].mxu0
    %v1040 = vadd.f32 %v206, %v1039
    %1041 = vdwg.mxu0
    %1042 = vmatprep.subr.bf16.mxu0 %v754
    %1043 = vmatpush1.bf16.msra.mxu0 %v753
    %1044 = vmatprep.subr.bf16.mxu0 %v756
    %1045 = vmatpush1.bf16.msra.mxu0 %v755
    %1046 = vmatprep.subr.bf16.mxu0 %v758
    %1047 = vmatpush1.bf16.msra.mxu0 %v757
    %1048 = vmatprep.subr.bf16.mxu0 %v760
    %1049 = vmatpush1.bf16.msra.mxu0 %v759
    %1050 = vmatprep.subr.bf16.mxu0 %v762
    %1051 = vmatpush1.bf16.msra.mxu0 %v761
    %1052 = vmatprep.subr.bf16.mxu0 %v764
    %1053 = vmatpush1.bf16.msra.mxu0 %v763
    %1054 = vmatprep.subr.bf16.mxu0 %v766
    %1055 = vmatpush1.bf16.msra.mxu0 %v765
    %1056 = vmatprep.subr.bf16.mxu0 %v768
    %1057 = vmatpush1.bf16.msra.mxu0 %v767
    %1058 = vmatprep.subr.bf16.mxu0 %v770
    %1059 = vmatpush1.bf16.msra.mxu0 %v769
    %1060 = vmatprep.subr.bf16.mxu0 %v772
    %1061 = vmatpush1.bf16.msra.mxu0 %v771
    %1062 = vmatprep.subr.bf16.mxu0 %v774
    %1063 = vmatpush1.bf16.msra.mxu0 %v773
    %1064 = vmatprep.subr.bf16.mxu0 %v776
    %1065 = vmatpush1.bf16.msra.mxu0 %v775
    %1066 = vmatprep.subr.bf16.mxu0 %v778
    %1067 = vmatpush1.bf16.msra.mxu0 %v777
    %1068 = vmatprep.subr.bf16.mxu0 %v780
    %1069 = vmatpush1.bf16.msra.mxu0 %v779
    %1070 = vmatprep.subr.bf16.mxu0 %v782
    %1071 = vmatpush1.bf16.msra.mxu0 %v781
    %1072 = vmatprep.subr.bf16.mxu0 %v784
    %1073 = vmatpush1.bf16.msra.mxu0 %v783
    %1074 = vmatprep.mubr.bf16.mxu0 %v404
    %1075 = vmatmul.mubr.bf16.gmra.mrb[0].mxu0 %v403
    %v1076 = vpop.f32.mrb[0].mxu0
    %v1077 = vadd.f32 %v884, %v1076
    %v1078 = vpop.f32.mrb[0].mxu0
    %v1079 = vadd.f32 %v886, %v1078
    %v1080 = vpop.f32.mrb[0].mxu0
    %v1081 = vadd.f32 %v888, %v1080
    %v1082 = vpop.f32.mrb[0].mxu0
    %v1083 = vadd.f32 %v890, %v1082
    %1084 = vmatprep.mubr.bf16.mxu0 %v408
    %1085 = vmatmul.mubr.bf16.gmra.mrb[0].mxu0 %v407
    %v1086 = vpop.f32.mrb[0].mxu0
    %v1087 = vadd.f32 %v894, %v1086
    %v1088 = vpop.f32.mrb[0].mxu0
    %v1089 = vadd.f32 %v896, %v1088
    %v1090 = vpop.f32.mrb[0].mxu0
    %v1091 = vadd.f32 %v898, %v1090
    %v1092 = vpop.f32.mrb[0].mxu0
    %v1093 = vadd.f32 %v900, %v1092
    %1094 = vmatprep.mubr.bf16.mxu0 %v412
    %1095 = vmatmul.mubr.bf16.gmra.mrb[0].mxu0 %v411
    %v1096 = vpop.f32.mrb[0].mxu0
    %v1097 = vadd.f32 %v904, %v1096
    %v1098 = vpop.f32.mrb[0].mxu0
    %v1099 = vadd.f32 %v906, %v1098
    %v1100 = vpop.f32.mrb[0].mxu0
    %v1101 = vadd.f32 %v908, %v1100
    %v1102 = vpop.f32.mrb[0].mxu0
    %v1103 = vadd.f32 %v910, %v1102
    %1104 = vmatprep.mubr.bf16.mxu0 %v416
    %1105 = vmatmul.mubr.bf16.gmra.mrb[0].mxu0 %v415
    %v1106 = vpop.f32.mrb[0].mxu0
    %v1107 = vadd.f32 %v914, %v1106
    %v1108 = vpop.f32.mrb[0].mxu0
    %v1109 = vadd.f32 %v916, %v1108
    %v1110 = vpop.f32.mrb[0].mxu0
    %v1111 = vadd.f32 %v918, %v1110
    %v1112 = vpop.f32.mrb[0].mxu0
    %v1113 = vadd.f32 %v920, %v1112
    %1114 = vmatprep.mubr.bf16.mxu0 %v420
    %1115 = vmatmul.mubr.bf16.gmra.mrb[0].mxu0 %v419
    %v1116 = vpop.f32.mrb[0].mxu0
    %v1117 = vadd.f32 %v924, %v1116
    %v1118 = vpop.f32.mrb[0].mxu0
    %v1119 = vadd.f32 %v926, %v1118
    %v1120 = vpop.f32.mrb[0].mxu0
    %v1121 = vadd.f32 %v928, %v1120
    %v1122 = vpop.f32.mrb[0].mxu0
    %v1123 = vadd.f32 %v930, %v1122
    %1124 = vmatprep.mubr.bf16.mxu0 %v424
    %1125 = vmatmul.mubr.bf16.gmra.mrb[0].mxu0 %v423
    %v1126 = vpop.f32.mrb[0].mxu0
    %v1127 = vadd.f32 %v934, %v1126
    %v1128 = vpop.f32.mrb[0].mxu0
    %v1129 = vadd.f32 %v936, %v1128
    %v1130 = vpop.f32.mrb[0].mxu0
    %v1131 = vadd.f32 %v938, %v1130
    %v1132 = vpop.f32.mrb[0].mxu0
    %v1133 = vadd.f32 %v940, %v1132
    %1134 = vmatprep.mubr.bf16.mxu0 %v428
    %1135 = vmatmul.mubr.bf16.gmra.mrb[0].mxu0 %v427
    %v1136 = vpop.f32.mrb[0].mxu0
    %v1137 = vadd.f32 %v944, %v1136
    %v1138 = vpop.f32.mrb[0].mxu0
    %v1139 = vadd.f32 %v946, %v1138
    %v1140 = vpop.f32.mrb[0].mxu0
    %v1141 = vadd.f32 %v948, %v1140
    %v1142 = vpop.f32.mrb[0].mxu0
    %v1143 = vadd.f32 %v950, %v1142
    %1144 = vmatprep.mubr.bf16.mxu0 %v432
    %1145 = vmatmul.mubr.bf16.gmra.mrb[0].mxu0 %v431
    %v1146 = vpop.f32.mrb[0].mxu0
    %v1147 = vadd.f32 %v954, %v1146
    %v1148 = vpop.f32.mrb[0].mxu0
    %v1149 = vadd.f32 %v956, %v1148
    %v1150 = vpop.f32.mrb[0].mxu0
    %v1151 = vadd.f32 %v958, %v1150
    %v1152 = vpop.f32.mrb[0].mxu0
    %v1153 = vadd.f32 %v960, %v1152
    %1154 = vmatprep.mubr.bf16.mxu0 %v436
    %1155 = vmatmul.mubr.bf16.gmra.mrb[0].mxu0 %v435
    %v1156 = vpop.f32.mrb[0].mxu0
    %v1157 = vadd.f32 %v964, %v1156
    %v1158 = vpop.f32.mrb[0].mxu0
    %v1159 = vadd.f32 %v966, %v1158
    %v1160 = vpop.f32.mrb[0].mxu0
    %v1161 = vadd.f32 %v968, %v1160
    %v1162 = vpop.f32.mrb[0].mxu0
    %v1163 = vadd.f32 %v970, %v1162
    %1164 = vmatprep.mubr.bf16.mxu0 %v440
    %1165 = vmatmul.mubr.bf16.gmra.mrb[0].mxu0 %v439
    %v1166 = vpop.f32.mrb[0].mxu0
    %v1167 = vadd.f32 %v974, %v1166
    %v1168 = vpop.f32.mrb[0].mxu0
    %v1169 = vadd.f32 %v976, %v1168
    %v1170 = vpop.f32.mrb[0].mxu0
    %v1171 = vadd.f32 %v978, %v1170
    %v1172 = vpop.f32.mrb[0].mxu0
    %v1173 = vadd.f32 %v980, %v1172
    %1174 = vmatprep.mubr.bf16.mxu0 %v444
    %1175 = vmatmul.mubr.bf16.gmra.mrb[0].mxu0 %v443
    %v1176 = vpop.f32.mrb[0].mxu0
    %v1177 = vadd.f32 %v984, %v1176
    %v1178 = vpop.f32.mrb[0].mxu0
    %v1179 = vadd.f32 %v986, %v1178
    %v1180 = vpop.f32.mrb[0].mxu0
    %v1181 = vadd.f32 %v988, %v1180
    %v1182 = vpop.f32.mrb[0].mxu0
    %v1183 = vadd.f32 %v990, %v1182
    %1184 = vmatprep.mubr.bf16.mxu0 %v448
    %1185 = vmatmul.mubr.bf16.gmra.mrb[0].mxu0 %v447
    %v1186 = vpop.f32.mrb[0].mxu0
    %v1187 = vadd.f32 %v994, %v1186
    %v1188 = vpop.f32.mrb[0].mxu0
    %v1189 = vadd.f32 %v996, %v1188
    %v1190 = vpop.f32.mrb[0].mxu0
    %v1191 = vadd.f32 %v998, %v1190
    %v1192 = vpop.f32.mrb[0].mxu0
    %v1193 = vadd.f32 %v1000, %v1192
    %1194 = vmatprep.mubr.bf16.mxu0 %v452
    %1195 = vmatmul.mubr.bf16.gmra.mrb[0].mxu0 %v451
    %v1196 = vpop.f32.mrb[0].mxu0
    %v1197 = vadd.f32 %v1004, %v1196
    %v1198 = vpop.f32.mrb[0].mxu0
    %v1199 = vadd.f32 %v1006, %v1198
    %v1200 = vpop.f32.mrb[0].mxu0
    %v1201 = vadd.f32 %v1008, %v1200
    %v1202 = vpop.f32.mrb[0].mxu0
    %v1203 = vadd.f32 %v1010, %v1202
    %1204 = vmatprep.mubr.bf16.mxu0 %v456
    %1205 = vmatmul.mubr.bf16.gmra.mrb[0].mxu0 %v455
    %v1206 = vpop.f32.mrb[0].mxu0
    %v1207 = vadd.f32 %v1014, %v1206
    %v1208 = vpop.f32.mrb[0].mxu0
    %v1209 = vadd.f32 %v1016, %v1208
    %v1210 = vpop.f32.mrb[0].mxu0
    %v1211 = vadd.f32 %v1018, %v1210
    %v1212 = vpop.f32.mrb[0].mxu0
    %v1213 = vadd.f32 %v1020, %v1212
    %1214 = vmatprep.mubr.bf16.mxu0 %v460
    %1215 = vmatmul.mubr.bf16.gmra.mrb[0].mxu0 %v459
    %v1216 = vpop.f32.mrb[0].mxu0
    %v1217 = vadd.f32 %v1024, %v1216
    %v1218 = vpop.f32.mrb[0].mxu0
    %v1219 = vadd.f32 %v1026, %v1218
    %v1220 = vpop.f32.mrb[0].mxu0
    %v1221 = vadd.f32 %v1028, %v1220
    %v1222 = vpop.f32.mrb[0].mxu0
    %v1223 = vadd.f32 %v1030, %v1222
    %1224 = vmatprep.mubr.bf16.mxu0 %v464
    %1225 = vmatmul.mubr.bf16.gmra.mrb[0].mxu0 %v463
    %v1226 = vpop.f32.mrb[0].mxu0
    %v1227 = vadd.f32 %v1034, %v1226
    %v1228 = vpop.f32.mrb[0].mxu0
    %v1229 = vadd.f32 %v1036, %v1228
    %v1230 = vpop.f32.mrb[0].mxu0
    %v1231 = vadd.f32 %v1038, %v1230
    %v1232 = vpop.f32.mrb[0].mxu0
    %v1233 = vadd.f32 %v1040, %v1232
    %1234 = vdwg.mxu0
    %v1235 = vmax.f32 %v1077, 0.0
    %v1236 = vmax.f32 %v1079, 0.0
    %v1237 = vmax.f32 %v1081, 0.0
    %v1238 = vmax.f32 %v1083, 0.0
    %v1239 = vmax.f32 %v1087, 0.0
    %v1240 = vmax.f32 %v1089, 0.0
    %v1241 = vmax.f32 %v1091, 0.0
    %v1242 = vmax.f32 %v1093, 0.0
    %v1243 = vmax.f32 %v1097, 0.0
    %v1244 = vmax.f32 %v1099, 0.0
    %v1245 = vmax.f32 %v1101, 0.0
    %v1246 = vmax.f32 %v1103, 0.0
    %v1247 = vmax.f32 %v1107, 0.0
    %v1248 = vmax.f32 %v1109, 0.0
    %v1249 = vmax.f32 %v1111, 0.0
    %v1250 = vmax.f32 %v1113, 0.0
    %v1251 = vmax.f32 %v1117, 0.0
    %v1252 = vmax.f32 %v1119, 0.0
    %v1253 = vmax.f32 %v1121, 0.0
    %v1254 = vmax.f32 %v1123, 0.0
    %v1255 = vmax.f32 %v1127, 0.0
    %v1256 = vmax.f32 %v1129, 0.0
    %v1257 = vmax.f32 %v1131, 0.0
    %v1258 = vmax.f32 %v1133, 0.0
    %v1259 = vmax.f32 %v1137, 0.0
    %v1260 = vmax.f32 %v1139, 0.0
    %v1261 = vmax.f32 %v1141, 0.0
    %v1262 = vmax.f32 %v1143, 0.0
    %v1263 = vmax.f32 %v1147, 0.0
    %v1264 = vmax.f32 %v1149, 0.0
    %v1265 = vmax.f32 %v1151, 0.0
    %v1266 = vmax.f32 %v1153, 0.0
    %v1267 = vmax.f32 %v1157, 0.0
    %v1268 = vmax.f32 %v1159, 0.0
    %v1269 = vmax.f32 %v1161, 0.0
    %v1270 = vmax.f32 %v1163, 0.0
    %v1271 = vmax.f32 %v1167, 0.0
    %v1272 = vmax.f32 %v1169, 0.0
    %v1273 = vmax.f32 %v1171, 0.0
    %v1274 = vmax.f32 %v1173, 0.0
    %v1275 = vmax.f32 %v1177, 0.0
    %v1276 = vmax.f32 %v1179, 0.0
    %v1277 = vmax.f32 %v1181, 0.0
    %v1278 = vmax.f32 %v1183, 0.0
    %v1279 = vmax.f32 %v1187, 0.0
    %v1280 = vmax.f32 %v1189, 0.0
    %v1281 = vmax.f32 %v1191, 0.0
    %v1282 = vmax.f32 %v1193, 0.0
    %v1283 = vmax.f32 %v1197, 0.0
    %v1284 = vmax.f32 %v1199, 0.0
    %v1285 = vmax.f32 %v1201, 0.0
    %v1286 = vmax.f32 %v1203, 0.0
    %v1287 = vmax.f32 %v1207, 0.0
    %v1288 = vmax.f32 %v1209, 0.0
    %v1289 = vmax.f32 %v1211, 0.0
    %v1290 = vmax.f32 %v1213, 0.0
    %v1291 = vmax.f32 %v1217, 0.0
    %v1292 = vmax.f32 %v1219, 0.0
    %v1293 = vmax.f32 %v1221, 0.0
    %v1294 = vmax.f32 %v1223, 0.0
    %v1295 = vmax.f32 %v1227, 0.0
    %v1296 = vmax.f32 %v1229, 0.0
    %v1297 = vmax.f32 %v1231, 0.0
    %v1298 = vmax.f32 %v1233, 0.0
    %v1299 = vpack.c.bf16 %v1237, %v1235
    %v1300 = vpack.c.bf16 %v1238, %v1236
    %v1301 = vpack.c.bf16 %v1241, %v1239
    %v1302 = vpack.c.bf16 %v1242, %v1240
    %v1303 = vpack.c.bf16 %v1245, %v1243
    %v1304 = vpack.c.bf16 %v1246, %v1244
    %v1305 = vpack.c.bf16 %v1249, %v1247
    %v1306 = vpack.c.bf16 %v1250, %v1248
    %v1307 = vpack.c.bf16 %v1253, %v1251
    %v1308 = vpack.c.bf16 %v1254, %v1252
    %v1309 = vpack.c.bf16 %v1257, %v1255
    %v1310 = vpack.c.bf16 %v1258, %v1256
    %v1311 = vpack.c.bf16 %v1261, %v1259
    %v1312 = vpack.c.bf16 %v1262, %v1260
    %v1313 = vpack.c.bf16 %v1265, %v1263
    %v1314 = vpack.c.bf16 %v1266, %v1264
    %v1315 = vpack.c.bf16 %v1269, %v1267
    %v1316 = vpack.c.bf16 %v1270, %v1268
    %v1317 = vpack.c.bf16 %v1273, %v1271
    %v1318 = vpack.c.bf16 %v1274, %v1272
    %v1319 = vpack.c.bf16 %v1277, %v1275
    %v1320 = vpack.c.bf16 %v1278, %v1276
    %v1321 = vpack.c.bf16 %v1281, %v1279
    %v1322 = vpack.c.bf16 %v1282, %v1280
    %v1323 = vpack.c.bf16 %v1285, %v1283
    %v1324 = vpack.c.bf16 %v1286, %v1284
    %v1325 = vpack.c.bf16 %v1289, %v1287
    %v1326 = vpack.c.bf16 %v1290, %v1288
    %v1327 = vpack.c.bf16 %v1293, %v1291
    %v1328 = vpack.c.bf16 %v1294, %v1292
    %v1329 = vpack.c.bf16 %v1297, %v1295
    %v1330 = vpack.c.bf16 %v1298, %v1296
    %v1331 = vld [vmem:[#allocation7] sm:$0xf]
    %v1332 = vld [vmem:[#allocation7 + $0x4] sm:$0xf]
    %v1333 = vld [vmem:[#allocation7 + $0x8] sm:$0xf]
    %v1334 = vld [vmem:[#allocation7 + $0xc] sm:$0xf]
    %v1335 = vld [vmem:[#allocation7 + $0x10] sm:$0xf]
    %v1336 = vld [vmem:[#allocation7 + $0x14] sm:$0xf]
    %v1337 = vld [vmem:[#allocation7 + $0x18] sm:$0xf]
    %v1338 = vld [vmem:[#allocation7 + $0x1c] sm:$0xf]
    %v1339 = vld [vmem:[#allocation7 + $0x20] sm:$0xf]
    %v1340 = vld [vmem:[#allocation7 + $0x24] sm:$0xf]
    %v1341 = vld [vmem:[#allocation7 + $0x28] sm:$0xf]
    %v1342 = vld [vmem:[#allocation7 + $0x2c] sm:$0xf]
    %v1343 = vld [vmem:[#allocation7 + $0x30] sm:$0xf]
    %v1344 = vld [vmem:[#allocation7 + $0x34] sm:$0xf]
    %v1345 = vld [vmem:[#allocation7 + $0x38] sm:$0xf]
    %v1346 = vld [vmem:[#allocation7 + $0x3c] sm:$0xf]
    %v1347 = vld [vmem:[#allocation7 + $0x40] sm:$0xf]
    %v1348 = vld [vmem:[#allocation7 + $0x44] sm:$0xf]
    %v1349 = vld [vmem:[#allocation7 + $0x48] sm:$0xf]
    %v1350 = vld [vmem:[#allocation7 + $0x4c] sm:$0xf]
    %v1351 = vld [vmem:[#allocation7 + $0x50] sm:$0xf]
    %v1352 = vld [vmem:[#allocation7 + $0x54] sm:$0xf]
    %v1353 = vld [vmem:[#allocation7 + $0x58] sm:$0xf]
    %v1354 = vld [vmem:[#allocation7 + $0x5c] sm:$0xf]
    %v1355 = vld [vmem:[#allocation7 + $0x60] sm:$0xf]
    %v1356 = vld [vmem:[#allocation7 + $0x64] sm:$0xf]
    %v1357 = vld [vmem:[#allocation7 + $0x68] sm:$0xf]
    %v1358 = vld [vmem:[#allocation7 + $0x6c] sm:$0xf]
    %v1359 = vld [vmem:[#allocation7 + $0x70] sm:$0xf]
    %v1360 = vld [vmem:[#allocation7 + $0x74] sm:$0xf]
    %v1361 = vld [vmem:[#allocation7 + $0x78] sm:$0xf]
    %v1362 = vld [vmem:[#allocation7 + $0x7c] sm:$0xf]
    %v1363 = vld [vmem:[%s4] sm:$0x1]
    %v1365 = vlaneseq
    %v1366 = vshrl.u32 %v1365, 7
    %v1367 = vsub.s32 0, %v1366
    %v1368 = vrot.slane %v1363, %v1367
    %v1402 = vunpack.c.l.b16 %v1331
    %v1403 = vunpack.c.l.b16 %v1332
    %v1404 = vunpack.c.l.b16 %v1333
    %v1405 = vunpack.c.l.b16 %v1334
    %v1406 = vunpack.c.l.b16 %v1335
    %v1407 = vunpack.c.l.b16 %v1336
    %v1408 = vunpack.c.l.b16 %v1337
    %v1409 = vunpack.c.l.b16 %v1338
    %v1410 = vunpack.c.l.b16 %v1339
    %v1411 = vunpack.c.l.b16 %v1340
    %v1412 = vunpack.c.l.b16 %v1341
    %v1413 = vunpack.c.l.b16 %v1342
    %v1414 = vunpack.c.l.b16 %v1343
    %v1415 = vunpack.c.l.b16 %v1344
    %v1416 = vunpack.c.l.b16 %v1345
    %v1417 = vunpack.c.l.b16 %v1346
    %v1418 = vunpack.c.l.b16 %v1347
    %v1419 = vunpack.c.l.b16 %v1348
    %v1420 = vunpack.c.l.b16 %v1349
    %v1421 = vunpack.c.l.b16 %v1350
    %v1422 = vunpack.c.l.b16 %v1351
    %v1423 = vunpack.c.l.b16 %v1352
    %v1424 = vunpack.c.l.b16 %v1353
    %v1425 = vunpack.c.l.b16 %v1354
    %v1426 = vunpack.c.l.b16 %v1355
    %v1427 = vunpack.c.l.b16 %v1356
    %v1428 = vunpack.c.l.b16 %v1357
    %v1429 = vunpack.c.l.b16 %v1358
    %v1430 = vunpack.c.l.b16 %v1359
    %v1431 = vunpack.c.l.b16 %v1360
    %v1432 = vunpack.c.l.b16 %v1361
    %v1433 = vunpack.c.l.b16 %v1362
    %v1434 = vpack.c.b16 %v1403, %v1402
    %v1435 = vpack.c.b16 %v1405, %v1404
    %v1436 = vpack.c.b16 %v1407, %v1406
    %v1437 = vpack.c.b16 %v1409, %v1408
    %v1438 = vpack.c.b16 %v1411, %v1410
    %v1439 = vpack.c.b16 %v1413, %v1412
    %v1440 = vpack.c.b16 %v1415, %v1414
    %v1441 = vpack.c.b16 %v1417, %v1416
    %v1442 = vpack.c.b16 %v1419, %v1418
    %v1443 = vpack.c.b16 %v1421, %v1420
    %v1444 = vpack.c.b16 %v1423, %v1422
    %v1445 = vpack.c.b16 %v1425, %v1424
    %v1446 = vpack.c.b16 %v1427, %v1426
    %v1447 = vpack.c.b16 %v1429, %v1428
    %v1448 = vpack.c.b16 %v1431, %v1430
    %v1449 = vpack.c.b16 %v1433, %v1432
    %1466 = vmatprep.subr.bf16.mxu0 0
    %1467 = vmatpush1.bf16.msra.mxu0 %v1434
    %1468 = vmatprep.subr.bf16.mxu0 0
    %1469 = vmatpush1.bf16.msra.mxu0 %v1435
    %1470 = vmatprep.subr.bf16.mxu0 0
    %1471 = vmatpush1.bf16.msra.mxu0 %v1436
    %1472 = vmatprep.subr.bf16.mxu0 0
    %1473 = vmatpush1.bf16.msra.mxu0 %v1437
    %1474 = vmatprep.subr.bf16.mxu0 0
    %1475 = vmatpush1.bf16.msra.mxu0 %v1438
    %1476 = vmatprep.subr.bf16.mxu0 0
    %1477 = vmatpush1.bf16.msra.mxu0 %v1439
    %1478 = vmatprep.subr.bf16.mxu0 0
    %1479 = vmatpush1.bf16.msra.mxu0 %v1440
    %1480 = vmatprep.subr.bf16.mxu0 0
    %1481 = vmatpush1.bf16.msra.mxu0 %v1441
    %1482 = vmatprep.subr.bf16.mxu0 0
    %1483 = vmatpush1.bf16.msra.mxu0 %v1442
    %1484 = vmatprep.subr.bf16.mxu0 0
    %1485 = vmatpush1.bf16.msra.mxu0 %v1443
    %1486 = vmatprep.subr.bf16.mxu0 0
    %1487 = vmatpush1.bf16.msra.mxu0 %v1444
    %1488 = vmatprep.subr.bf16.mxu0 0
    %1489 = vmatpush1.bf16.msra.mxu0 %v1445
    %1490 = vmatprep.subr.bf16.mxu0 0
    %1491 = vmatpush1.bf16.msra.mxu0 %v1446
    %1492 = vmatprep.subr.bf16.mxu0 0
    %1493 = vmatpush1.bf16.msra.mxu0 %v1447
    %1494 = vmatprep.subr.bf16.mxu0 0
    %1495 = vmatpush1.bf16.msra.mxu0 %v1448
    %1496 = vmatprep.subr.bf16.mxu0 0
    %1497 = vmatpush1.bf16.msra.mxu0 %v1449
    %1498 = vmatprep.mubr.bf16.mxu0 %v1300
    %1499 = vmatmul.mubr.bf16.gmra.mrb[0].mxu0 %v1299
    %v1500 = vpop.f32.mrb[0].mxu0
    %v1501 = vadd.f32 %v1368, %v1500
    %v1502 = vpop.f32.mrb[0].mxu0
    %v1503 = vpop.f32.mrb[0].mxu0
    %v1504 = vadd.f32 %v1368, %v1503
    %v1505 = vpop.f32.mrb[0].mxu0
    %1506 = vmatprep.mubr.bf16.mxu0 %v1302
    %1507 = vmatmul.mubr.bf16.gmra.mrb[0].mxu0 %v1301
    %v1508 = vpop.f32.mrb[0].mxu0
    %v1509 = vadd.f32 %v1368, %v1508
    %v1510 = vpop.f32.mrb[0].mxu0
    %v1511 = vpop.f32.mrb[0].mxu0
    %v1512 = vadd.f32 %v1368, %v1511
    %v1513 = vpop.f32.mrb[0].mxu0
    %1514 = vmatprep.mubr.bf16.mxu0 %v1304
    %1515 = vmatmul.mubr.bf16.gmra.mrb[0].mxu0 %v1303
    %v1516 = vpop.f32.mrb[0].mxu0
    %v1517 = vadd.f32 %v1368, %v1516
    %v1518 = vpop.f32.mrb[0].mxu0
    %v1519 = vpop.f32.mrb[0].mxu0
    %v1520 = vadd.f32 %v1368, %v1519
    %v1521 = vpop.f32.mrb[0].mxu0
    %1522 = vmatprep.mubr.bf16.mxu0 %v1306
    %1523 = vmatmul.mubr.bf16.gmra.mrb[0].mxu0 %v1305
    %v1524 = vpop.f32.mrb[0].mxu0
    %v1525 = vadd.f32 %v1368, %v1524
    %v1526 = vpop.f32.mrb[0].mxu0
    %v1527 = vpop.f32.mrb[0].mxu0
    %v1528 = vadd.f32 %v1368, %v1527
    %v1529 = vpop.f32.mrb[0].mxu0
    %1530 = vmatprep.mubr.bf16.mxu0 %v1308
    %1531 = vmatmul.mubr.bf16.gmra.mrb[0].mxu0 %v1307
    %v1532 = vpop.f32.mrb[0].mxu0
    %v1533 = vadd.f32 %v1368, %v1532
    %v1534 = vpop.f32.mrb[0].mxu0
    %v1535 = vpop.f32.mrb[0].mxu0
    %v1536 = vadd.f32 %v1368, %v1535
    %v1537 = vpop.f32.mrb[0].mxu0
    %1538 = vmatprep.mubr.bf16.mxu0 %v1310
    %1539 = vmatmul.mubr.bf16.gmra.mrb[0].mxu0 %v1309
    %v1540 = vpop.f32.mrb[0].mxu0
    %v1541 = vadd.f32 %v1368, %v1540
    %v1542 = vpop.f32.mrb[0].mxu0
    %v1543 = vpop.f32.mrb[0].mxu0
    %v1544 = vadd.f32 %v1368, %v1543
    %v1545 = vpop.f32.mrb[0].mxu0
    %1546 = vmatprep.mubr.bf16.mxu0 %v1312
    %1547 = vmatmul.mubr.bf16.gmra.mrb[0].mxu0 %v1311
    %v1548 = vpop.f32.mrb[0].mxu0
    %v1549 = vadd.f32 %v1368, %v1548
    %v1550 = vpop.f32.mrb[0].mxu0
    %v1551 = vpop.f32.mrb[0].mxu0
    %v1552 = vadd.f32 %v1368, %v1551
    %v1553 = vpop.f32.mrb[0].mxu0
    %1554 = vmatprep.mubr.bf16.mxu0 %v1314
    %1555 = vmatmul.mubr.bf16.gmra.mrb[0].mxu0 %v1313
    %v1556 = vpop.f32.mrb[0].mxu0
    %v1557 = vadd.f32 %v1368, %v1556
    %v1558 = vpop.f32.mrb[0].mxu0
    %v1559 = vpop.f32.mrb[0].mxu0
    %v1560 = vadd.f32 %v1368, %v1559
    %v1561 = vpop.f32.mrb[0].mxu0
    %1562 = vmatprep.mubr.bf16.mxu0 %v1316
    %1563 = vmatmul.mubr.bf16.gmra.mrb[0].mxu0 %v1315
    %v1564 = vpop.f32.mrb[0].mxu0
    %v1565 = vadd.f32 %v1368, %v1564
    %v1566 = vpop.f32.mrb[0].mxu0
    %v1567 = vpop.f32.mrb[0].mxu0
    %v1568 = vadd.f32 %v1368, %v1567
    %v1569 = vpop.f32.mrb[0].mxu0
    %1570 = vmatprep.mubr.bf16.mxu0 %v1318
    %1571 = vmatmul.mubr.bf16.gmra.mrb[0].mxu0 %v1317
    %v1572 = vpop.f32.mrb[0].mxu0
    %v1573 = vadd.f32 %v1368, %v1572
    %v1574 = vpop.f32.mrb[0].mxu0
    %v1575 = vpop.f32.mrb[0].mxu0
    %v1576 = vadd.f32 %v1368, %v1575
    %v1577 = vpop.f32.mrb[0].mxu0
    %1578 = vmatprep.mubr.bf16.mxu0 %v1320
    %1579 = vmatmul.mubr.bf16.gmra.mrb[0].mxu0 %v1319
    %v1580 = vpop.f32.mrb[0].mxu0
    %v1581 = vadd.f32 %v1368, %v1580
    %v1582 = vpop.f32.mrb[0].mxu0
    %v1583 = vpop.f32.mrb[0].mxu0
    %v1584 = vadd.f32 %v1368, %v1583
    %v1585 = vpop.f32.mrb[0].mxu0
    %1586 = vmatprep.mubr.bf16.mxu0 %v1322
    %1587 = vmatmul.mubr.bf16.gmra.mrb[0].mxu0 %v1321
    %v1588 = vpop.f32.mrb[0].mxu0
    %v1589 = vadd.f32 %v1368, %v1588
    %v1590 = vpop.f32.mrb[0].mxu0
    %v1591 = vpop.f32.mrb[0].mxu0
    %v1592 = vadd.f32 %v1368, %v1591
    %v1593 = vpop.f32.mrb[0].mxu0
    %1594 = vmatprep.mubr.bf16.mxu0 %v1324
    %1595 = vmatmul.mubr.bf16.gmra.mrb[0].mxu0 %v1323
    %v1596 = vpop.f32.mrb[0].mxu0
    %v1597 = vadd.f32 %v1368, %v1596
    %v1598 = vpop.f32.mrb[0].mxu0
    %v1599 = vpop.f32.mrb[0].mxu0
    %v1600 = vadd.f32 %v1368, %v1599
    %v1601 = vpop.f32.mrb[0].mxu0
    %1602 = vmatprep.mubr.bf16.mxu0 %v1326
    %1603 = vmatmul.mubr.bf16.gmra.mrb[0].mxu0 %v1325
    %v1604 = vpop.f32.mrb[0].mxu0
    %v1605 = vadd.f32 %v1368, %v1604
    %v1606 = vpop.f32.mrb[0].mxu0
    %v1607 = vpop.f32.mrb[0].mxu0
    %v1608 = vadd.f32 %v1368, %v1607
    %v1609 = vpop.f32.mrb[0].mxu0
    %1610 = vmatprep.mubr.bf16.mxu0 %v1328
    %1611 = vmatmul.mubr.bf16.gmra.mrb[0].mxu0 %v1327
    %v1612 = vpop.f32.mrb[0].mxu0
    %v1613 = vadd.f32 %v1368, %v1612
    %v1614 = vpop.f32.mrb[0].mxu0
    %v1615 = vpop.f32.mrb[0].mxu0
    %v1616 = vadd.f32 %v1368, %v1615
    %v1617 = vpop.f32.mrb[0].mxu0
    %1618 = vmatprep.mubr.bf16.mxu0 %v1330
    %1619 = vmatmul.mubr.bf16.gmra.mrb[0].mxu0 %v1329
    %v1620 = vpop.f32.mrb[0].mxu0
    %v1621 = vadd.f32 %v1368, %v1620
    %v1622 = vpop.f32.mrb[0].mxu0
    %v1623 = vpop.f32.mrb[0].mxu0
    %v1624 = vadd.f32 %v1368, %v1623
    %v1625 = vpop.f32.mrb[0].mxu0
    %1626 = vdwg.mxu0
    %v1627 = vmax.f32 %v1501, 0.0
    %v1628 = vmax.f32 %v1504, 0.0
    %v1629 = vmax.f32 %v1509, 0.0
    %v1630 = vmax.f32 %v1512, 0.0
    %v1631 = vmax.f32 %v1517, 0.0
    %v1632 = vmax.f32 %v1520, 0.0
    %v1633 = vmax.f32 %v1525, 0.0
    %v1634 = vmax.f32 %v1528, 0.0
    %v1635 = vmax.f32 %v1533, 0.0
    %v1636 = vmax.f32 %v1536, 0.0
    %v1637 = vmax.f32 %v1541, 0.0
    %v1638 = vmax.f32 %v1544, 0.0
    %v1639 = vmax.f32 %v1549, 0.0
    %v1640 = vmax.f32 %v1552, 0.0
    %v1641 = vmax.f32 %v1557, 0.0
    %v1642 = vmax.f32 %v1560, 0.0
    %v1643 = vmax.f32 %v1565, 0.0
    %v1644 = vmax.f32 %v1568, 0.0
    %v1645 = vmax.f32 %v1573, 0.0
    %v1646 = vmax.f32 %v1576, 0.0
    %v1647 = vmax.f32 %v1581, 0.0
    %v1648 = vmax.f32 %v1584, 0.0
    %v1649 = vmax.f32 %v1589, 0.0
    %v1650 = vmax.f32 %v1592, 0.0
    %v1651 = vmax.f32 %v1597, 0.0
    %v1652 = vmax.f32 %v1600, 0.0
    %v1653 = vmax.f32 %v1605, 0.0
    %v1654 = vmax.f32 %v1608, 0.0
    %v1655 = vmax.f32 %v1613, 0.0
    %v1656 = vmax.f32 %v1616, 0.0
    %v1657 = vmax.f32 %v1621, 0.0
    %v1658 = vmax.f32 %v1624, 0.0
    %v1659 = vld [vmem:[%s5] sm:$0xff]
    %v1660 = vld [vmem:[%s6] sm:$0xff]
    %1662 = vset.pattern.permute.xlu0 0
    %1663 = vperm.xlu0 %1662, %v1660
    %v1664 = vpop.permute.xlu0 %1663
    %1666 = vmatprep.subr.mxu0 0.0
    %1667 = vmatpush1.xpose.msra.mxu0 %v1627
    %1668 = vmatprep.subr.mxu0 0.0
    %1669 = vmatpush1.xpose.msra.mxu0 %v1628
    %1670 = vmatprep.subr.mxu0 0.0
    %1671 = vmatpush1.xpose.msra.mxu0 %v1629
    %1672 = vmatprep.subr.mxu0 0.0
    %1673 = vmatpush1.xpose.msra.mxu0 %v1630
    %1674 = vmatprep.subr.mxu0 0.0
    %1675 = vmatpush1.xpose.msra.mxu0 %v1631
    %1676 = vmatprep.subr.mxu0 0.0
    %1677 = vmatpush1.xpose.msra.mxu0 %v1632
    %1678 = vmatprep.subr.mxu0 0.0
    %1679 = vmatpush1.xpose.msra.mxu0 %v1633
    %1680 = vmatprep.subr.mxu0 0.0
    %1681 = vmatpush1.xpose.msra.mxu0 %v1634
    %1682 = vmatprep.subr.mxu0 0.0
    %1683 = vmatpush1.xpose.msra.mxu0 %v1635
    %1684 = vmatprep.subr.mxu0 0.0
    %1685 = vmatpush1.xpose.msra.mxu0 %v1636
    %1686 = vmatprep.subr.mxu0 0.0
    %1687 = vmatpush1.xpose.msra.mxu0 %v1637
    %1688 = vmatprep.subr.mxu0 0.0
    %1689 = vmatpush1.xpose.msra.mxu0 %v1638
    %1690 = vmatprep.subr.mxu0 0.0
    %1691 = vmatpush1.xpose.msra.mxu0 %v1639
    %1692 = vmatprep.subr.mxu0 0.0
    %1693 = vmatpush1.xpose.msra.mxu0 %v1640
    %1694 = vmatprep.subr.mxu0 0.0
    %1695 = vmatpush1.xpose.msra.mxu0 %v1641
    %1696 = vmatprep.subr.mxu0 0.0
    %1697 = vmatpush1.xpose.msra.mxu0 %v1642
    %1698 = vmatprep.subr.mxu0 0.0
    %1699 = vmatpush1.xpose.msra.mxu0 %v1643
    %1700 = vmatprep.subr.mxu0 0.0
    %1701 = vmatpush1.xpose.msra.mxu0 %v1644
    %1702 = vmatprep.subr.mxu0 0.0
    %1703 = vmatpush1.xpose.msra.mxu0 %v1645
    %1704 = vmatprep.subr.mxu0 0.0
    %1705 = vmatpush1.xpose.msra.mxu0 %v1646
    %1706 = vmatprep.subr.mxu0 0.0
    %1707 = vmatpush1.xpose.msra.mxu0 %v1647
    %1708 = vmatprep.subr.mxu0 0.0
    %1709 = vmatpush1.xpose.msra.mxu0 %v1648
    %1710 = vmatprep.subr.mxu0 0.0
    %1711 = vmatpush1.xpose.msra.mxu0 %v1649
    %1712 = vmatprep.subr.mxu0 0.0
    %1713 = vmatpush1.xpose.msra.mxu0 %v1650
    %1714 = vmatprep.subr.mxu0 0.0
    %1715 = vmatpush1.xpose.msra.mxu0 %v1651
    %1716 = vmatprep.subr.mxu0 0.0
    %1717 = vmatpush1.xpose.msra.mxu0 %v1652
    %1718 = vmatprep.subr.mxu0 0.0
    %1719 = vmatpush1.xpose.msra.mxu0 %v1653
    %1720 = vmatprep.subr.mxu0 0.0
    %1721 = vmatpush1.xpose.msra.mxu0 %v1654
    %1722 = vmatprep.subr.mxu0 0.0
    %1723 = vmatpush1.xpose.msra.mxu0 %v1655
    %1724 = vmatprep.subr.mxu0 0.0
    %1725 = vmatpush1.xpose.msra.mxu0 %v1656
    %1726 = vmatprep.subr.mxu0 0.0
    %1727 = vmatpush1.xpose.msra.mxu0 %v1657
    %1728 = vmatprep.subr.mxu0 0.0
    %1729 = vmatpush1.xpose.msra.mxu0 %v1658
    %1730 = vmatprep.mubr.f32.mxu0 0.0
    %1731 = vmatmul.mubr.f32.gmra.mrb[0].mxu0 %v1659
    %v1732 = vpop.f32.mrb[0].mxu0
    %v1733 = vadd.f32 %v1664, %v1732
    %v1734 = vpop.f32.mrb[0].mxu0
    %v1735 = vadd.f32 %v1664, %v1734
    %1736 = vdwg.mxu0
    %1737 = vst [vmem:[#allocation8] sm:$0xff] %v1733
    %1738 = vst [vmem:[#allocation8 + $0x8] sm:$0xff] %v1735
    // Predicated region
    $region42: #{tpu_custom_call.1} parent=1 // pred_check
      _
    $region43: #{tpu_custom_call.1} parent=1 // pred_check_branch
      %1740 = sbr.rel (0) target = $region45
    $region44: #{tpu_custom_call.1} parent=1 // pred_region
      %s1742 = ssub.s32 256, 256
      %1743 = vsyncadd [#allocation4], %s1742
      %s1745 = sshll.u32 [#allocation8], 4
      %s1746 = int_to_ptr.vmem [resolvable:$true] %s1745
      %1748 = dma.vmem_to_hbm [thread:$0]  %s1746, 256, %s7, [#allocation4]
    $region45: #{tpu_custom_call.1} parent=1 // pred_fallthru
      _
    // Predicated region
    $region46: #{tpu_custom_call.1} parent=1 // pred_check
      _
    $region47: #{tpu_custom_call.1} parent=1 // pred_check_branch
      %1750 = sbr.rel (0) target = $region49
    $region48: #{tpu_custom_call.1} parent=1 // pred_region
      %1751 = dma.done [#allocation4], 256
    $region49: #{tpu_custom_call.1} parent=1 // pred_fallthru
      _
    %1752 = vsyncpa [#allocation3], 1
    %1753 = vsyncpa [#allocation6], 1
    %1754 = vsyncpa [#allocation4], 1

</llo_original>
